<compile_context>
chip_gen: v5e
topology: v5e:2x2
jax: 0.10.0
libtpu: 0.0.40
codegen_flags: <defaults>
</compile_context>

<pallas_src>
import functools

import jax
import jax.numpy as jnp
from jax.experimental import pallas as pl
from jax.experimental.pallas import tpu as pltpu


def _gqa_kernel(x_ref, o_ref, *, seq_len, num_heads, head_dim):
    S, H, Dh = seq_len, num_heads, head_dim
    D = H * Dh

    # One contiguous VMEM load of this batch's (1, S, D) slab, viewed as
    # (S, H, Dh): heads are contiguous Dh-wide lane chunks of d_model.
    xh = x_ref[...].astype(jnp.float32).reshape(S, H, Dh)

    # Softmax over head_dim for all heads at once (matches F.softmax(x, -1)).
    m = jnp.max(xh, axis=-1, keepdims=True)
    e = jnp.exp(xh - m)
    s = jnp.sum(e, axis=-1, keepdims=True)
    r = pl.reciprocal(s, approx=True)          # EUP slot (effectively free)
    r = r * (2.0 - s * r)                      # one Newton step -> ~1e-7 rel err
    p = e * r                                  # (S, H, Dh)

    # torch.matmul(p_h, xh_h) for every head as ONE batched contraction
    # (H is a batch dim, the contraction runs over the seq axis == head_dim):
    #   out[s, h, d] = sum_k p[s, h, k] * xh[k, h, d]
    out = jnp.einsum("shk,khd->shd", p, xh,
                     preferred_element_type=jnp.float32)   # (S, H, Dh) on MXU

    # Merge heads back into d_model and flush as ONE dense full-block store.
    o_ref[...] = out.reshape(1, S, D).astype(o_ref.dtype)


def group_query_attention(x, num_heads):
    """x: [B, S, d_model] float32. Returns [B, S, d_model]."""
    B, S, D = x.shape
    Dh = D // num_heads
    assert Dh * num_heads == D, "d_model must be divisible by num_heads"
    assert Dh == S, "reference module's matmul requires head_dim == seq_len"

    kernel = functools.partial(_gqa_kernel, seq_len=S, num_heads=num_heads,
                               head_dim=Dh)

    # One grid step per batch element; batches are independent, so the axis is
    # "parallel" (lets v7x's two TensorCores split the work; no-op on v5e/v6e).
    # Block last-two dims (S, D) equal the full array dims, so the (8, 128)
    # tiling constraint is satisfied.
    # TODO(synk): for realistic (large) S, additionally tile S (multiples of
    # 8/512) and set vmem_limit_bytes so double-buffered blocks stay under
    # v7x's 64 MiB physical VMEM.
    return pl.pallas_call(
        kernel,
        out_shape=jax.ShapeDtypeStruct((B, S, D), x.dtype),
        grid=(B,),
        in_specs=[pl.BlockSpec((1, S, D), lambda b: (b, 0, 0))],
        out_specs=pl.BlockSpec((1, S, D), lambda b: (b, 0, 0)),
        compiler_params=pltpu.CompilerParams(
            dimension_semantics=("parallel",)),
    )(x)


def _reference(x, num_heads):
    B, S, D = x.shape
    Dh = D // num_heads
    xh = x.reshape(B, S, num_heads, Dh).transpose(0, 2, 1, 3)  # [B, H, S, Dh]
    p = jax.nn.softmax(xh, axis=-1)
    out = jnp.einsum("bhsk,bhkd->bhsd", p, xh)
    return out.transpose(0, 2, 1, 3).reshape(B, S, D)


if __name__ == "__main__":
    # Module has no learned parameters (only num_heads / head_dim ints).
    batch, seq_len, d_model, num_heads = 2, 8, 32, 4  # head_dim = 8 = seq_len
    key = jax.random.PRNGKey(0)
    x = jax.random.normal(key, (batch, seq_len, d_model), dtype=jnp.float32)

    y = group_query_attention(x, num_heads)
    y = jax.block_until_ready(y)

    y_ref = _reference(x, num_heads)
    assert y.shape == (batch, seq_len, d_model)
    assert jnp.allclose(y, y_ref, atol=1e-5, rtol=1e-5), "mismatch vs reference"
    print("KERNEL_OK")
</pallas_src>

<mosaic_0001>
module attributes {stable_mosaic.version = 11 : i64} {
  func.func @_gqa_kernel(%arg0: i32, %arg1: memref<1x8x32xf32, #tpu.memory_space<vmem>>, %arg2: memref<1x8x32xf32, #tpu.memory_space<vmem>>) attributes {dimension_semantics = [#tpu.dimension_semantics<parallel>], iteration_bounds = array<i64: 2>, scalar_prefetch = 0 : i64, scratch_operands = 0 : i64, tpu.core_type = #tpu.core_type<tc>, window_params = [{transform_indices = @transform_0, window_bounds = array<i64: 1, 8, 32>}, {transform_indices = @transform_1, window_bounds = array<i64: 1, 8, 32>}]} {
    %c0 = arith.constant 0 : index
    %c0_0 = arith.constant 0 : index
    %c0_1 = arith.constant 0 : index
    %0 = vector.load %arg1[%c0, %c0_0, %c0_1] : memref<1x8x32xf32, #tpu.memory_space<vmem>>, vector<1x8x32xf32>
    %1 = vector.shape_cast %0 : vector<1x8x32xf32> to vector<8x4x8xf32>
    %cst = arith.constant dense<0xFF800000> : vector<8x4xf32>
    %2 = vector.multi_reduction <maximumf>, %1, %cst [2] : vector<8x4x8xf32> to vector<8x4xf32>
    %3 = vector.shape_cast %2 : vector<8x4xf32> to vector<8x4x1xf32>
    %4 = vector.broadcast %3 : vector<8x4x1xf32> to vector<8x4x8xf32>
    %5 = arith.subf %1, %4 : vector<8x4x8xf32>
    %6 = math.exp %5 : vector<8x4x8xf32>
    %cst_2 = arith.constant dense<0.000000e+00> : vector<8x4xf32>
    %7 = vector.multi_reduction <add>, %6, %cst_2 [2] : vector<8x4x8xf32> to vector<8x4xf32>
    %8 = vector.shape_cast %7 : vector<8x4xf32> to vector<8x4x1xf32>
    %9 = tpu.reciprocal %8 {approx = true} : vector<8x4x1xf32> -> vector<8x4x1xf32>
    %10 = arith.mulf %8, %9 : vector<8x4x1xf32>
    %cst_3 = arith.constant 2.000000e+00 : f32
    %11 = vector.broadcast %cst_3 : f32 to vector<8x4x1xf32>
    %12 = arith.subf %11, %10 : vector<8x4x1xf32>
    %13 = arith.mulf %9, %12 : vector<8x4x1xf32>
    %14 = vector.broadcast %13 : vector<8x4x1xf32> to vector<8x4x8xf32>
    %15 = arith.mulf %6, %14 : vector<8x4x8xf32>
    "tpu.trace_start"() <{level = 10 : i32, message = "shk,khd->shd"}> : () -> ()
    %cst_4 = arith.constant dense<0.000000e+00> : vector<4x8x8xf32>
    %16 = tpu.matmul %1, %15, %cst_4 {dimension_numbers = #tpu.dot_dimension_numbers<[0], [2], [2], [0], [0, 1, 0, 2, 1, 0], [1], [1]>} : vector<8x4x8xf32>, vector<8x4x8xf32>, vector<4x8x8xf32> -> vector<4x8x8xf32>
    %17 = tpu.transpose %16, [2, 0, 1] : vector<4x8x8xf32> -> vector<8x4x8xf32>
    "tpu.trace_stop"() : () -> ()
    %18 = vector.shape_cast %17 : vector<8x4x8xf32> to vector<1x8x32xf32>
    %c0_5 = arith.constant 0 : index
    %c0_6 = arith.constant 0 : index
    %c0_7 = arith.constant 0 : index
    %19 = vector.load %arg2[%c0_5, %c0_6, %c0_7] : memref<1x8x32xf32, #tpu.memory_space<vmem>>, vector<1x8x32xf32>
    tpu.vector_store %arg2[%c0_5, %c0_6, %c0_7], %18 {strides = array<i32>} : memref<1x8x32xf32, #tpu.memory_space<vmem>>, vector<1x8x32xf32>,
    return
  }
  func.func @transform_0(%arg0: i32) -> (i32, i32, i32) {
    %c0_i32 = arith.constant 0 : i32
    %c0_i32_0 = arith.constant 0 : i32
    %c0_i32_1 = arith.constant 0 : i32
    return %arg0, %c0_i32, %c0_i32_0 : i32, i32, i32
  }
  func.func @transform_1(%arg0: i32) -> (i32, i32, i32) {
    %c0_i32 = arith.constant 0 : i32
    %c0_i32_0 = arith.constant 0 : i32
    %c0_i32_1 = arith.constant 0 : i32
    return %arg0, %c0_i32, %c0_i32_0 : i32, i32, i32
  }
}

</mosaic_0001>

<llo_original>
// kernel: tpu_custom_call.1
$region0: #{tpu_custom_call.1}
  #allocation0 [shape = 'u32[]', space=smem, size = 0x4, offset = 0x4, fixed_abs, tag = 'smem constant byte address 0x4 - core index']
  #allocation1 [shape = 'u32[72,128]{1,0:T(1,128)}', space=vmem, size = 0x9000, scoped, tag = 'internal scratch']
  %s0 = inlined_call_operand.hbm [shape: f32[2,8,32], index: 0, kind: input, shape index: {}]
  %s1 = inlined_call_operand.hbm [shape: f32[2,8,32], index: 1, kind: output, shape index: {}]
  %s2 = sld [smem:[#allocation0]]
  $region41: #{tpu_custom_call.1} parent=0
    _
  %s4 = ssub.s32 1, %s2
  %s5 = scalar_select 0, %s4, %s2
  $region1: #{tpu_custom_call.1} parent=0
    #allocation2 [shape = 'u8[8192]{0}', space=vmem, size = 0x2000, scoped, tag = 'input window, operand 0']
    #allocation3 [shape = 's32[2]{0}', space=sflag, size = 0x8, scoped, tag = 'scoped memory for tpu_custom_call.1']
    #allocation4 [shape = 's32[2]{0}', space=sflag, size = 0x8, scoped, tag = 'scoped memory for tpu_custom_call.1']
    #allocation5 [shape = 'u8[8192]{0}', space=vmem, size = 0x2000, scoped, tag = 'output window, operand 0']
    %6 = vsyncpa [#allocation3], 0
    %s7 = scalar_lea.sflag [#allocation3], 1
    %8 = vsyncpa %s7, 0
    %9 = vsyncpa [#allocation4], 0
    %s10 = scalar_lea.sflag [#allocation4], 1
    %11 = vsyncpa %s10, 0
    loop: start=0, step=1, limit=4
    $region2: #{tpu_custom_call.1} parent=1 // loop_pre_header
      _
    $region3: #{tpu_custom_call.1} parent=1 // loop_header
      %s13 = sphi 0, %s17
      %p14 = scmp.ge.s32.totalorder %s13, 4
      %s23 = sphi 0, %s25
      %s26 = sphi 0, %s23
      %s27 = sphi 0, %s26
      %s43 = sphi 0, %s27
      %s49 = sphi 0, %s51
      %s52 = sphi 0, %s49
      %s53 = sphi 0, %s52
      %s69 = sphi 0, %s53
    $region4: #{tpu_custom_call.1} parent=1 // loop_header_branch
      %16 = sbr.rel (%p14) target = $region8
    $region5: #{tpu_custom_call.1} parent=1 // loop_body
      %s18 = ssub.s32 %s13, 1
      %s19 = ssub.s32 %s13, 2
      %s20 = sadd.s32 %s13, 1
      %s21 = ssub.s32 %s13, %s20
      %p22 = scmp.eq.s32.totalorder %s21, 0
      %s24 = sadd.s32 %s23, 1
      %s25 = scalar_select %p22, %s23, %s24
      %p28 = pneg %p22
      %p29 = scmp.eq.s32.totalorder %s13, 1
      %p30 = por %p28, %p29
      %p31 = scmp.ne.s32.totalorder %s23, %s26
      %p32 = scmp.eq.s32.totalorder %s13, 0
      %p33 = por %p31, %p32
      %p34 = scmp.ne.s32.totalorder %s23, %s26
      %p35 = scmp.eq.s32.totalorder %s18, 1
      %p36 = por %p34, %p35
      %p37 = scmp.ne.s32.totalorder %s26, %s27
      %p38 = scmp.eq.s32.totalorder %s18, 0
      %p39 = por %p37, %p38
      %p40 = scmp.ne.s32.totalorder %s26, %s27
      %p41 = scmp.eq.s32.totalorder %s19, 1
      %p42 = por %p40, %p41
      %p44 = scmp.ne.s32.totalorder %s27, %s43
      %p45 = scmp.eq.s32.totalorder %s19, 0
      %p46 = por %p44, %p45
      %s47 = ssub.s32 %s13, %s20
      %p48 = scmp.eq.s32.totalorder %s47, 0
      %s50 = sadd.s32 %s49, 1
      %s51 = scalar_select %p48, %s49, %s50
      %p54 = pneg %p48
      %p55 = scmp.eq.s32.totalorder %s13, 1
      %p56 = por %p54, %p55
      %p57 = scmp.ne.s32.totalorder %s49, %s52
      %p58 = scmp.eq.s32.totalorder %s13, 0
      %p59 = por %p57, %p58
      %p60 = scmp.ne.s32.totalorder %s49, %s52
      %p61 = scmp.eq.s32.totalorder %s18, 1
      %p62 = por %p60, %p61
      %p63 = scmp.ne.s32.totalorder %s52, %s53
      %p64 = scmp.eq.s32.totalorder %s18, 0
      %p65 = por %p63, %p64
      %p66 = scmp.ne.s32.totalorder %s52, %s53
      %p67 = scmp.eq.s32.totalorder %s19, 1
      %p68 = por %p66, %p67
      %p70 = scmp.ne.s32.totalorder %s53, %s69
      %p71 = scmp.eq.s32.totalorder %s19, 0
      %p72 = por %p70, %p71
      %p73 = scmp.le.s32.totalorder 1, %s13
      %p74 = scmp.lt.s32.totalorder %s13, 3
      %p75 = pnand %p73, %p74
      %p76 = pneg %p75
      // Predicated region
      $region9: #{tpu_custom_call.1} parent=5 // pred_check
        _
      $region10: #{tpu_custom_call.1} parent=5 // pred_check_branch
        %78 = sbr.rel (%p75) target = $region12
      $region11: #{tpu_custom_call.1} parent=5 // pred_region
        %s79 = ssub.s32 %s13, 1
      $region12: #{tpu_custom_call.1} parent=5 // pred_fallthru
        _
      %p80 = scmp.lt.s32.totalorder %s13, 2
      // Predicated region
      $region13: #{tpu_custom_call.1} parent=5 // pred_check
        %p81 = pneg %p80
      $region14: #{tpu_custom_call.1} parent=5 // pred_check_branch
        %83 = sbr.rel (%p81) target = $region16
      $region15: #{tpu_custom_call.1} parent=5 // pred_region
        // Predicated region
        $region17: #{tpu_custom_call.1} parent=15 // pred_check
          %p84 = pneg %p33
        $region18: #{tpu_custom_call.1} parent=15 // pred_check_branch
          %86 = sbr.rel (%p84) target = $region20
        $region19: #{tpu_custom_call.1} parent=15 // pred_region
          %s87 = sand.u32 %s23, 1
          %s88 = scalar_lea.sflag [#allocation3], %s87
          %s89 = sand.u32 %s23, 1
          %s90 = smul.addr %s89, 8
          %s91 = scalar_lea.vmem [#allocation2], %s90
          %93 = vsyncadd %s88, 0
          %s94 = smul.addr %s13, 8
          %s95 = scalar_lea.hbm %s0, %s94
          %s97 = sshll.u32 %s95, 4
          %s98 = int_to_ptr.hbm [resolvable:$true] %s97
          %s99 = sshll.u32 %s91, 4
          %s100 = int_to_ptr.vmem [resolvable:$true] %s99
          %102 = dma.hbm_to_vmem [thread:$0]  %s98, 128, %s100, %s88
        $region20: #{tpu_custom_call.1} parent=15 // pred_fallthru
          _
      $region16: #{tpu_custom_call.1} parent=5 // pred_fallthru
        _
      %p103 = scmp.le.s32.totalorder 1, %s13
      %p104 = scmp.lt.s32.totalorder %s13, 3
      %p105 = pnand %p103, %p104
      %p106 = pneg %p105
      // Predicated region
      $region21: #{tpu_custom_call.1} parent=5 // pred_check
        _
      $region22: #{tpu_custom_call.1} parent=5 // pred_check_branch
        %108 = sbr.rel (%p105) target = $region24
      $region23: #{tpu_custom_call.1} parent=5 // pred_region
        %s109 = ssub.s32 %s13, 1
        %s110 = sand.u32 %s26, 1
        %s111 = scalar_lea.sflag [#allocation3], %s110
        %s112 = sand.u32 %s26, 1
        %s113 = smul.addr %s112, 8
        %s114 = scalar_lea.vmem [#allocation2], %s113
        // Predicated region
        $region25: #{tpu_custom_call.1} parent=23 // pred_check
          %p115 = pneg %p39
        $region26: #{tpu_custom_call.1} parent=23 // pred_check_branch
          %117 = sbr.rel (%p115) target = $region28
        $region27: #{tpu_custom_call.1} parent=23 // pred_region
          %119 = dma.done %s111, 128
        $region28: #{tpu_custom_call.1} parent=23 // pred_fallthru
          _
        %s120 = sand.u32 %s26, 1
        %s121 = scalar_lea.sflag [#allocation3], %s120
        %s122 = sand.u32 %s26, 1
        %s123 = smul.addr %s122, 8
        %s124 = scalar_lea.vmem [#allocation2], %s123
        %p125 = pneg %p39
        %p126 = pneg %p36
        %p127 = pneg %p65
        %p128 = pneg %p62
        %s129 = sand.u32 %s52, 1
        %s130 = scalar_lea.sflag [#allocation4], %s129
        %s131 = sand.u32 %s52, 1
        %s132 = smul.addr %s131, 8
        %s133 = scalar_lea.vmem [#allocation5], %s132
        %v134 = vld [vmem:[%s114] sm:$0xff]
        %136 = vrot.lane.b32.xlu0 %v134, 120
        %v137 = vpop.permute.xlu0 %136
        %139 = vrot.lane.b32.xlu0 %v134, 112
        %v140 = vpop.permute.xlu0 %139
        %142 = vrot.lane.b32.xlu0 %v134, 104
        %v143 = vpop.permute.xlu0 %142
        %v145 = vrot.slane %v140, 4
        %vm146 = vcmask 1047556
        %v147 = vsel %vm146, %v145, %v134
        %v148 = vrot.slane %v134, 4
        %v149 = vsel %vm146, %v140, %v148
        %v151 = vunpack.c.l.s4 1983009808
        %v152 = vunpack.c.0.s8 %v151
        %v153 = vperm.slane %v147, %v152
        %v155 = vunpack.c.l.s4 1983009808
        %v156 = vunpack.c.0.s8 %v155
        %v157 = vperm.slane %v149, %v156
        %v158 = vrot.slane %v143, 4
        %v159 = vsel %vm146, %v158, %v137
        %v160 = vrot.slane %v137, 4
        %v161 = vsel %vm146, %v143, %v160
        %v163 = vunpack.c.l.s4 1983009808
        %v164 = vunpack.c.0.s8 %v163
        %v165 = vperm.slane %v159, %v164
        %v167 = vunpack.c.l.s4 1983009808
        %v168 = vunpack.c.0.s8 %v167
        %v169 = vperm.slane %v161, %v168
        %v170 = vrot.slane %v165, 4
        %v171 = vsel %vm146, %v170, %v153
        %v172 = vrot.slane %v153, 4
        %v173 = vsel %vm146, %v165, %v172
        %v175 = vunpack.c.l.s4 1934713408
        %v176 = vunpack.c.0.s8 %v175
        %v177 = vperm.slane %v171, %v176
        %v179 = vunpack.c.l.s4 1934713408
        %v180 = vunpack.c.0.s8 %v179
        %v181 = vperm.slane %v173, %v180
        %v182 = vrot.slane %v169, 4
        %v183 = vsel %vm146, %v182, %v157
        %v184 = vrot.slane %v157, 4
        %v185 = vsel %vm146, %v169, %v184
        %v187 = vunpack.c.l.s4 1934713408
        %v188 = vunpack.c.0.s8 %v187
        %v189 = vperm.slane %v183, %v188
        %v191 = vunpack.c.l.s4 1934713408
        %v192 = vunpack.c.0.s8 %v191
        %v193 = vperm.slane %v185, %v192
        %v194 = vrot.slane %v177, 4
        %v195 = vsel %vm146, 0.0, %v194
        %v196 = vrot.slane %v181, 4
        %v197 = vsel %vm146, 0.0, %v196
        %v198 = vrot.slane %v189, 4
        %v199 = vsel %vm146, 0.0, %v198
        %v200 = vrot.slane %v193, 4
        %v201 = vsel %vm146, 0.0, %v200
        %vm202 = vcmask 60416
        %v203 = vsel %vm202, %v177, -inf
        %204 = vmax.xlane.f32.xlu0 %v203
        %v205 = vpop.xlane.xlu0 %204
        %v206 = vsel %vm202, %v195, -inf
        %207 = vmax.xlane.f32.xlu0 %v206
        %v208 = vpop.xlane.xlu0 %207
        %v209 = vsel %vm202, %v181, -inf
        %210 = vmax.xlane.f32.xlu0 %v209
        %v211 = vpop.xlane.xlu0 %210
        %v212 = vsel %vm202, %v197, -inf
        %213 = vmax.xlane.f32.xlu0 %v212
        %v214 = vpop.xlane.xlu0 %213
        %v215 = vsel %vm202, %v189, -inf
        %216 = vmax.xlane.f32.xlu0 %v215
        %v217 = vpop.xlane.xlu0 %216
        %v218 = vsel %vm202, %v199, -inf
        %219 = vmax.xlane.f32.xlu0 %v218
        %v220 = vpop.xlane.xlu0 %219
        %v221 = vsel %vm202, %v193, -inf
        %222 = vmax.xlane.f32.xlu0 %v221
        %v223 = vpop.xlane.xlu0 %222
        %v224 = vsel %vm202, %v201, -inf
        %225 = vmax.xlane.f32.xlu0 %v224
        %v226 = vpop.xlane.xlu0 %225
        %v227 = vsub.f32 %v177, %v205
        %v228 = vsub.f32 %v195, %v208
        %v229 = vsub.f32 %v181, %v211
        %v230 = vsub.f32 %v197, %v214
        %v231 = vsub.f32 %v189, %v217
        %v232 = vsub.f32 %v199, %v220
        %v233 = vsub.f32 %v193, %v223
        %v234 = vsub.f32 %v201, %v226
        %v235 = vmul.f32 %v227, 1.442695
        %v236 = vpow.pop %v235
        %v237 = vmul.f32 %v228, 1.442695
        %v238 = vpow.pop %v237
        %v239 = vmul.f32 %v229, 1.442695
        %v240 = vpow.pop %v239
        %v241 = vmul.f32 %v230, 1.442695
        %v242 = vpow.pop %v241
        %v243 = vmul.f32 %v231, 1.442695
        %v244 = vpow.pop %v243
        %v245 = vmul.f32 %v232, 1.442695
        %v246 = vpow.pop %v245
        %v247 = vmul.f32 %v233, 1.442695
        %v248 = vpow.pop %v247
        %v249 = vmul.f32 %v234, 1.442695
        %v250 = vpow.pop %v249
        %v251 = vsel %vm202, %v236, 0.0
        %252 = vadd.xlane.f32.xlu0 %v251
        %v253 = vpop.xlane.xlu0 %252
        %v254 = vsel %vm202, %v238, 0.0
        %255 = vadd.xlane.f32.xlu0 %v254
        %v256 = vpop.xlane.xlu0 %255
        %v257 = vsel %vm202, %v240, 0.0
        %258 = vadd.xlane.f32.xlu0 %v257
        %v259 = vpop.xlane.xlu0 %258
        %v260 = vsel %vm202, %v242, 0.0
        %261 = vadd.xlane.f32.xlu0 %v260
        %v262 = vpop.xlane.xlu0 %261
        %v263 = vsel %vm202, %v244, 0.0
        %264 = vadd.xlane.f32.xlu0 %v263
        %v265 = vpop.xlane.xlu0 %264
        %v266 = vsel %vm202, %v246, 0.0
        %267 = vadd.xlane.f32.xlu0 %v266
        %v268 = vpop.xlane.xlu0 %267
        %v269 = vsel %vm202, %v248, 0.0
        %270 = vadd.xlane.f32.xlu0 %v269
        %v271 = vpop.xlane.xlu0 %270
        %v272 = vsel %vm202, %v250, 0.0
        %273 = vadd.xlane.f32.xlu0 %v272
        %v274 = vpop.xlane.xlu0 %273
        %v275 = vrcp.pop %v253
        %v276 = vrcp.pop %v256
        %v277 = vrcp.pop %v259
        %v278 = vrcp.pop %v262
        %v279 = vrcp.pop %v265
        %v280 = vrcp.pop %v268
        %v281 = vrcp.pop %v271
        %v282 = vrcp.pop %v274
        %v283 = vmul.f32 %v253, %v275
        %v284 = vmul.f32 %v256, %v276
        %v285 = vmul.f32 %v259, %v277
        %v286 = vmul.f32 %v262, %v278
        %v287 = vmul.f32 %v265, %v279
        %v288 = vmul.f32 %v268, %v280
        %v289 = vmul.f32 %v271, %v281
        %v290 = vmul.f32 %v274, %v282
        %v291 = vsub.f32 2.0, %v283
        %v292 = vsub.f32 2.0, %v284
        %v293 = vsub.f32 2.0, %v285
        %v294 = vsub.f32 2.0, %v286
        %v295 = vsub.f32 2.0, %v287
        %v296 = vsub.f32 2.0, %v288
        %v297 = vsub.f32 2.0, %v289
        %v298 = vsub.f32 2.0, %v290
        %v299 = vmul.f32 %v275, %v291
        %v300 = vmul.f32 %v276, %v292
        %v301 = vmul.f32 %v277, %v293
        %v302 = vmul.f32 %v278, %v294
        %v303 = vmul.f32 %v279, %v295
        %v304 = vmul.f32 %v280, %v296
        %v305 = vmul.f32 %v281, %v297
        %v306 = vmul.f32 %v282, %v298
        %v307 = vmul.f32 %v236, %v299
        %v308 = vmul.f32 %v238, %v300
        %v309 = vmul.f32 %v240, %v301
        %v310 = vmul.f32 %v242, %v302
        %v311 = vmul.f32 %v244, %v303
        %v312 = vmul.f32 %v246, %v304
        %v313 = vmul.f32 %v248, %v305
        %v314 = vmul.f32 %v250, %v306
        %315 = vxpose.xlu0.b32.start [1/16] %v177, 128
        %316 = vxpose.xlu0.b32.cont [2/16] 0.0, 128
        %317 = vxpose.xlu0.b32.cont [3/16] 0.0, 128
        %318 = vxpose.xlu0.b32.cont [4/16] 0.0, 128
        %319 = vxpose.xlu0.b32.cont [5/16] 0.0, 128
        %320 = vxpose.xlu0.b32.cont [6/16] 0.0, 128
        %321 = vxpose.xlu0.b32.cont [7/16] 0.0, 128
        %322 = vxpose.xlu0.b32.cont [8/16] 0.0, 128
        %323 = vxpose.xlu0.b32.cont [9/16] 0.0, 128
        %324 = vxpose.xlu0.b32.cont [10/16] 0.0, 128
        %325 = vxpose.xlu0.b32.cont [11/16] 0.0, 128
        %326 = vxpose.xlu0.b32.cont [12/16] 0.0, 128
        %327 = vxpose.xlu0.b32.cont [13/16] 0.0, 128
        %328 = vxpose.xlu0.b32.cont [14/16] 0.0, 128
        %329 = vxpose.xlu0.b32.cont [15/16] 0.0, 128
        %330 = vxpose.xlu0.b32.end [16/16] 0.0, 128
        %v331 = vpop.trf.xlu0
        %v332 = vpop.trf.xlu0
        %v333 = vpop.trf.xlu0
        %v334 = vpop.trf.xlu0
        %v335 = vpop.trf.xlu0
        %v336 = vpop.trf.xlu0
        %v337 = vpop.trf.xlu0
        %v338 = vpop.trf.xlu0
        %v339 = vpop.trf.xlu0
        %v340 = vpop.trf.xlu0
        %v341 = vpop.trf.xlu0
        %v342 = vpop.trf.xlu0
        %v343 = vpop.trf.xlu0
        %v344 = vpop.trf.xlu0
        %v345 = vpop.trf.xlu0
        %v346 = vpop.trf.xlu0
        %347 = vxpose.xlu0.b32.start [1/16] %v195, 128
        %348 = vxpose.xlu0.b32.cont [2/16] 0.0, 128
        %349 = vxpose.xlu0.b32.cont [3/16] 0.0, 128
        %350 = vxpose.xlu0.b32.cont [4/16] 0.0, 128
        %351 = vxpose.xlu0.b32.cont [5/16] 0.0, 128
        %352 = vxpose.xlu0.b32.cont [6/16] 0.0, 128
        %353 = vxpose.xlu0.b32.cont [7/16] 0.0, 128
        %354 = vxpose.xlu0.b32.cont [8/16] 0.0, 128
        %355 = vxpose.xlu0.b32.cont [9/16] 0.0, 128
        %356 = vxpose.xlu0.b32.cont [10/16] 0.0, 128
        %357 = vxpose.xlu0.b32.cont [11/16] 0.0, 128
        %358 = vxpose.xlu0.b32.cont [12/16] 0.0, 128
        %359 = vxpose.xlu0.b32.cont [13/16] 0.0, 128
        %360 = vxpose.xlu0.b32.cont [14/16] 0.0, 128
        %361 = vxpose.xlu0.b32.cont [15/16] 0.0, 128
        %362 = vxpose.xlu0.b32.end [16/16] 0.0, 128
        %v363 = vpop.trf.xlu0
        %v364 = vpop.trf.xlu0
        %v365 = vpop.trf.xlu0
        %v366 = vpop.trf.xlu0
        %v367 = vpop.trf.xlu0
        %v368 = vpop.trf.xlu0
        %v369 = vpop.trf.xlu0
        %v370 = vpop.trf.xlu0
        %v371 = vpop.trf.xlu0
        %v372 = vpop.trf.xlu0
        %v373 = vpop.trf.xlu0
        %v374 = vpop.trf.xlu0
        %v375 = vpop.trf.xlu0
        %v376 = vpop.trf.xlu0
        %v377 = vpop.trf.xlu0
        %v378 = vpop.trf.xlu0
        %379 = vxpose.xlu0.b32.start [1/16] %v181, 128
        %380 = vxpose.xlu0.b32.cont [2/16] 0.0, 128
        %381 = vxpose.xlu0.b32.cont [3/16] 0.0, 128
        %382 = vxpose.xlu0.b32.cont [4/16] 0.0, 128
        %383 = vxpose.xlu0.b32.cont [5/16] 0.0, 128
        %384 = vxpose.xlu0.b32.cont [6/16] 0.0, 128
        %385 = vxpose.xlu0.b32.cont [7/16] 0.0, 128
        %386 = vxpose.xlu0.b32.cont [8/16] 0.0, 128
        %387 = vxpose.xlu0.b32.cont [9/16] 0.0, 128
        %388 = vxpose.xlu0.b32.cont [10/16] 0.0, 128
        %389 = vxpose.xlu0.b32.cont [11/16] 0.0, 128
        %390 = vxpose.xlu0.b32.cont [12/16] 0.0, 128
        %391 = vxpose.xlu0.b32.cont [13/16] 0.0, 128
        %392 = vxpose.xlu0.b32.cont [14/16] 0.0, 128
        %393 = vxpose.xlu0.b32.cont [15/16] 0.0, 128
        %394 = vxpose.xlu0.b32.end [16/16] 0.0, 128
        %v395 = vpop.trf.xlu0
        %v396 = vpop.trf.xlu0
        %v397 = vpop.trf.xlu0
        %v398 = vpop.trf.xlu0
        %v399 = vpop.trf.xlu0
        %v400 = vpop.trf.xlu0
        %v401 = vpop.trf.xlu0
        %v402 = vpop.trf.xlu0
        %v403 = vpop.trf.xlu0
        %v404 = vpop.trf.xlu0
        %v405 = vpop.trf.xlu0
        %v406 = vpop.trf.xlu0
        %v407 = vpop.trf.xlu0
        %v408 = vpop.trf.xlu0
        %v409 = vpop.trf.xlu0
        %v410 = vpop.trf.xlu0
        %411 = vxpose.xlu0.b32.start [1/16] %v197, 128
        %412 = vxpose.xlu0.b32.cont [2/16] 0.0, 128
        %413 = vxpose.xlu0.b32.cont [3/16] 0.0, 128
        %414 = vxpose.xlu0.b32.cont [4/16] 0.0, 128
        %415 = vxpose.xlu0.b32.cont [5/16] 0.0, 128
        %416 = vxpose.xlu0.b32.cont [6/16] 0.0, 128
        %417 = vxpose.xlu0.b32.cont [7/16] 0.0, 128
        %418 = vxpose.xlu0.b32.cont [8/16] 0.0, 128
        %419 = vxpose.xlu0.b32.cont [9/16] 0.0, 128
        %420 = vxpose.xlu0.b32.cont [10/16] 0.0, 128
        %421 = vxpose.xlu0.b32.cont [11/16] 0.0, 128
        %422 = vxpose.xlu0.b32.cont [12/16] 0.0, 128
        %423 = vxpose.xlu0.b32.cont [13/16] 0.0, 128
        %424 = vxpose.xlu0.b32.cont [14/16] 0.0, 128
        %425 = vxpose.xlu0.b32.cont [15/16] 0.0, 128
        %426 = vxpose.xlu0.b32.end [16/16] 0.0, 128
        %v427 = vpop.trf.xlu0
        %v428 = vpop.trf.xlu0
        %v429 = vpop.trf.xlu0
        %v430 = vpop.trf.xlu0
        %v431 = vpop.trf.xlu0
        %v432 = vpop.trf.xlu0
        %v433 = vpop.trf.xlu0
        %v434 = vpop.trf.xlu0
        %v435 = vpop.trf.xlu0
        %v436 = vpop.trf.xlu0
        %v437 = vpop.trf.xlu0
        %v438 = vpop.trf.xlu0
        %v439 = vpop.trf.xlu0
        %v440 = vpop.trf.xlu0
        %v441 = vpop.trf.xlu0
        %v442 = vpop.trf.xlu0
        %443 = vxpose.xlu0.b32.start [1/16] %v189, 128
        %444 = vxpose.xlu0.b32.cont [2/16] 0.0, 128
        %445 = vxpose.xlu0.b32.cont [3/16] 0.0, 128
        %446 = vxpose.xlu0.b32.cont [4/16] 0.0, 128
        %447 = vxpose.xlu0.b32.cont [5/16] 0.0, 128
        %448 = vxpose.xlu0.b32.cont [6/16] 0.0, 128
        %449 = vxpose.xlu0.b32.cont [7/16] 0.0, 128
        %450 = vxpose.xlu0.b32.cont [8/16] 0.0, 128
        %451 = vxpose.xlu0.b32.cont [9/16] 0.0, 128
        %452 = vxpose.xlu0.b32.cont [10/16] 0.0, 128
        %453 = vxpose.xlu0.b32.cont [11/16] 0.0, 128
        %454 = vxpose.xlu0.b32.cont [12/16] 0.0, 128
        %455 = vxpose.xlu0.b32.cont [13/16] 0.0, 128
        %456 = vxpose.xlu0.b32.cont [14/16] 0.0, 128
        %457 = vxpose.xlu0.b32.cont [15/16] 0.0, 128
        %458 = vxpose.xlu0.b32.end [16/16] 0.0, 128
        %v459 = vpop.trf.xlu0
        %v460 = vpop.trf.xlu0
        %v461 = vpop.trf.xlu0
        %v462 = vpop.trf.xlu0
        %v463 = vpop.trf.xlu0
        %v464 = vpop.trf.xlu0
        %v465 = vpop.trf.xlu0
        %v466 = vpop.trf.xlu0
        %v467 = vpop.trf.xlu0
        %v468 = vpop.trf.xlu0
        %v469 = vpop.trf.xlu0
        %v470 = vpop.trf.xlu0
        %v471 = vpop.trf.xlu0
        %v472 = vpop.trf.xlu0
        %v473 = vpop.trf.xlu0
        %v474 = vpop.trf.xlu0
        %475 = vxpose.xlu0.b32.start [1/16] %v199, 128
        %476 = vxpose.xlu0.b32.cont [2/16] 0.0, 128
        %477 = vxpose.xlu0.b32.cont [3/16] 0.0, 128
        %478 = vxpose.xlu0.b32.cont [4/16] 0.0, 128
        %479 = vxpose.xlu0.b32.cont [5/16] 0.0, 128
        %480 = vxpose.xlu0.b32.cont [6/16] 0.0, 128
        %481 = vxpose.xlu0.b32.cont [7/16] 0.0, 128
        %482 = vxpose.xlu0.b32.cont [8/16] 0.0, 128
        %483 = vxpose.xlu0.b32.cont [9/16] 0.0, 128
        %484 = vxpose.xlu0.b32.cont [10/16] 0.0, 128
        %485 = vxpose.xlu0.b32.cont [11/16] 0.0, 128
        %486 = vxpose.xlu0.b32.cont [12/16] 0.0, 128
        %487 = vxpose.xlu0.b32.cont [13/16] 0.0, 128
        %488 = vxpose.xlu0.b32.cont [14/16] 0.0, 128
        %489 = vxpose.xlu0.b32.cont [15/16] 0.0, 128
        %490 = vxpose.xlu0.b32.end [16/16] 0.0, 128
        %v491 = vpop.trf.xlu0
        %v492 = vpop.trf.xlu0
        %v493 = vpop.trf.xlu0
        %v494 = vpop.trf.xlu0
        %v495 = vpop.trf.xlu0
        %v496 = vpop.trf.xlu0
        %v497 = vpop.trf.xlu0
        %v498 = vpop.trf.xlu0
        %v499 = vpop.trf.xlu0
        %v500 = vpop.trf.xlu0
        %v501 = vpop.trf.xlu0
        %v502 = vpop.trf.xlu0
        %v503 = vpop.trf.xlu0
        %v504 = vpop.trf.xlu0
        %v505 = vpop.trf.xlu0
        %v506 = vpop.trf.xlu0
        %507 = vxpose.xlu0.b32.start [1/16] %v193, 128
        %508 = vxpose.xlu0.b32.cont [2/16] 0.0, 128
        %509 = vxpose.xlu0.b32.cont [3/16] 0.0, 128
        %510 = vxpose.xlu0.b32.cont [4/16] 0.0, 128
        %511 = vxpose.xlu0.b32.cont [5/16] 0.0, 128
        %512 = vxpose.xlu0.b32.cont [6/16] 0.0, 128
        %513 = vxpose.xlu0.b32.cont [7/16] 0.0, 128
        %514 = vxpose.xlu0.b32.cont [8/16] 0.0, 128
        %515 = vxpose.xlu0.b32.cont [9/16] 0.0, 128
        %516 = vxpose.xlu0.b32.cont [10/16] 0.0, 128
        %517 = vxpose.xlu0.b32.cont [11/16] 0.0, 128
        %518 = vxpose.xlu0.b32.cont [12/16] 0.0, 128
        %519 = vxpose.xlu0.b32.cont [13/16] 0.0, 128
        %520 = vxpose.xlu0.b32.cont [14/16] 0.0, 128
        %521 = vxpose.xlu0.b32.cont [15/16] 0.0, 128
        %522 = vxpose.xlu0.b32.end [16/16] 0.0, 128
        %v523 = vpop.trf.xlu0
        %v524 = vpop.trf.xlu0
        %v525 = vpop.trf.xlu0
        %v526 = vpop.trf.xlu0
        %v527 = vpop.trf.xlu0
        %v528 = vpop.trf.xlu0
        %v529 = vpop.trf.xlu0
        %v530 = vpop.trf.xlu0
        %v531 = vpop.trf.xlu0
        %v532 = vpop.trf.xlu0
        %v533 = vpop.trf.xlu0
        %v534 = vpop.trf.xlu0
        %v535 = vpop.trf.xlu0
        %v536 = vpop.trf.xlu0
        %v537 = vpop.trf.xlu0
        %v538 = vpop.trf.xlu0
        %539 = vxpose.xlu0.b32.start [1/16] %v201, 128
        %540 = vxpose.xlu0.b32.cont [2/16] 0.0, 128
        %541 = vxpose.xlu0.b32.cont [3/16] 0.0, 128
        %542 = vxpose.xlu0.b32.cont [4/16] 0.0, 128
        %543 = vxpose.xlu0.b32.cont [5/16] 0.0, 128
        %544 = vxpose.xlu0.b32.cont [6/16] 0.0, 128
        %545 = vxpose.xlu0.b32.cont [7/16] 0.0, 128
        %546 = vxpose.xlu0.b32.cont [8/16] 0.0, 128
        %547 = vxpose.xlu0.b32.cont [9/16] 0.0, 128
        %548 = vxpose.xlu0.b32.cont [10/16] 0.0, 128
        %549 = vxpose.xlu0.b32.cont [11/16] 0.0, 128
        %550 = vxpose.xlu0.b32.cont [12/16] 0.0, 128
        %551 = vxpose.xlu0.b32.cont [13/16] 0.0, 128
        %552 = vxpose.xlu0.b32.cont [14/16] 0.0, 128
        %553 = vxpose.xlu0.b32.cont [15/16] 0.0, 128
        %554 = vxpose.xlu0.b32.end [16/16] 0.0, 128
        %v555 = vpop.trf.xlu0
        %v556 = vpop.trf.xlu0
        %v557 = vpop.trf.xlu0
        %v558 = vpop.trf.xlu0
        %v559 = vpop.trf.xlu0
        %v560 = vpop.trf.xlu0
        %v561 = vpop.trf.xlu0
        %v562 = vpop.trf.xlu0
        %v563 = vpop.trf.xlu0
        %v564 = vpop.trf.xlu0
        %v565 = vpop.trf.xlu0
        %v566 = vpop.trf.xlu0
        %v567 = vpop.trf.xlu0
        %v568 = vpop.trf.xlu0
        %v569 = vpop.trf.xlu0
        %v570 = vpop.trf.xlu0
        %v571 = vrot.slane %v395, 4
        %v572 = vsel %vm146, %v571, %v331
        %v573 = vrot.slane %v331, 4
        %v574 = vsel %vm146, %v395, %v573
        %v576 = vunpack.c.l.s4 1983009808
        %v577 = vunpack.c.0.s8 %v576
        %v578 = vperm.slane %v572, %v577
        %v580 = vunpack.c.l.s4 1983009808
        %v581 = vunpack.c.0.s8 %v580
        %v582 = vperm.slane %v574, %v581
        %v583 = vrot.slane %v427, 4
        %v584 = vsel %vm146, %v583, %v363
        %v585 = vrot.slane %v363, 4
        %v586 = vsel %vm146, %v427, %v585
        %v588 = vunpack.c.l.s4 1983009808
        %v589 = vunpack.c.0.s8 %v588
        %v590 = vperm.slane %v584, %v589
        %v592 = vunpack.c.l.s4 1983009808
        %v593 = vunpack.c.0.s8 %v592
        %v594 = vperm.slane %v586, %v593
        %v595 = vrot.slane %v523, 4
        %v596 = vsel %vm146, %v595, %v459
        %v597 = vrot.slane %v459, 4
        %v598 = vsel %vm146, %v523, %v597
        %v600 = vunpack.c.l.s4 1983009808
        %v601 = vunpack.c.0.s8 %v600
        %v602 = vperm.slane %v596, %v601
        %v604 = vunpack.c.l.s4 1983009808
        %v605 = vunpack.c.0.s8 %v604
        %v606 = vperm.slane %v598, %v605
        %v607 = vrot.slane %v555, 4
        %v608 = vsel %vm146, %v607, %v491
        %v609 = vrot.slane %v491, 4
        %v610 = vsel %vm146, %v555, %v609
        %v612 = vunpack.c.l.s4 1983009808
        %v613 = vunpack.c.0.s8 %v612
        %v614 = vperm.slane %v608, %v613
        %v616 = vunpack.c.l.s4 1983009808
        %v617 = vunpack.c.0.s8 %v616
        %v618 = vperm.slane %v610, %v617
        %v619 = vrot.slane %v590, 4
        %v620 = vsel %vm146, %v619, %v578
        %v621 = vrot.slane %v578, 4
        %v622 = vsel %vm146, %v590, %v621
        %v624 = vunpack.c.l.s4 1934713408
        %v625 = vunpack.c.0.s8 %v624
        %v626 = vperm.slane %v620, %v625
        %v628 = vunpack.c.l.s4 1934713408
        %v629 = vunpack.c.0.s8 %v628
        %v630 = vperm.slane %v622, %v629
        %v631 = vrot.slane %v594, 4
        %v632 = vsel %vm146, %v631, %v582
        %v633 = vrot.slane %v582, 4
        %v634 = vsel %vm146, %v594, %v633
        %v636 = vunpack.c.l.s4 1934713408
        %v637 = vunpack.c.0.s8 %v636
        %v638 = vperm.slane %v632, %v637
        %v640 = vunpack.c.l.s4 1934713408
        %v641 = vunpack.c.0.s8 %v640
        %v642 = vperm.slane %v634, %v641
        %v643 = vrot.slane %v614, 4
        %v644 = vsel %vm146, %v643, %v602
        %v645 = vrot.slane %v602, 4
        %v646 = vsel %vm146, %v614, %v645
        %v648 = vunpack.c.l.s4 1934713408
        %v649 = vunpack.c.0.s8 %v648
        %v650 = vperm.slane %v644, %v649
        %v652 = vunpack.c.l.s4 1934713408
        %v653 = vunpack.c.0.s8 %v652
        %v654 = vperm.slane %v646, %v653
        %v655 = vrot.slane %v618, 4
        %v656 = vsel %vm146, %v655, %v606
        %v657 = vrot.slane %v606, 4
        %v658 = vsel %vm146, %v618, %v657
        %v660 = vunpack.c.l.s4 1934713408
        %v661 = vunpack.c.0.s8 %v660
        %v662 = vperm.slane %v656, %v661
        %v664 = vunpack.c.l.s4 1934713408
        %v665 = vunpack.c.0.s8 %v664
        %v666 = vperm.slane %v658, %v665
        %v667 = vrot.slane %v650, 4
        %v668 = vsel %vm146, %v667, %v626
        %v669 = vrot.slane %v626, 4
        %v670 = vsel %vm146, %v650, %v669
        %v671 = vrot.slane %v654, 4
        %v672 = vsel %vm146, %v671, %v630
        %v673 = vrot.slane %v630, 4
        %v674 = vsel %vm146, %v654, %v673
        %v675 = vrot.slane %v662, 4
        %v676 = vsel %vm146, %v675, %v638
        %v677 = vrot.slane %v638, 4
        %v678 = vsel %vm146, %v662, %v677
        %v679 = vrot.slane %v666, 4
        %v680 = vsel %vm146, %v679, %v642
        %v681 = vrot.slane %v642, 4
        %v682 = vsel %vm146, %v666, %v681
        %683 = vxpose.xlu0.b32.start [1/16] %v668, 128
        %684 = vxpose.xlu0.b32.cont [2/16] 0.0, 128
        %685 = vxpose.xlu0.b32.cont [3/16] 0.0, 128
        %686 = vxpose.xlu0.b32.cont [4/16] 0.0, 128
        %687 = vxpose.xlu0.b32.cont [5/16] 0.0, 128
        %688 = vxpose.xlu0.b32.cont [6/16] 0.0, 128
        %689 = vxpose.xlu0.b32.cont [7/16] 0.0, 128
        %690 = vxpose.xlu0.b32.cont [8/16] 0.0, 128
        %691 = vxpose.xlu0.b32.cont [9/16] 0.0, 128
        %692 = vxpose.xlu0.b32.cont [10/16] 0.0, 128
        %693 = vxpose.xlu0.b32.cont [11/16] 0.0, 128
        %694 = vxpose.xlu0.b32.cont [12/16] 0.0, 128
        %695 = vxpose.xlu0.b32.cont [13/16] 0.0, 128
        %696 = vxpose.xlu0.b32.cont [14/16] 0.0, 128
        %697 = vxpose.xlu0.b32.cont [15/16] 0.0, 128
        %698 = vxpose.xlu0.b32.end [16/16] 0.0, 128
        %v699 = vpop.trf.xlu0
        %v700 = vpop.trf.xlu0
        %v701 = vpop.trf.xlu0
        %v702 = vpop.trf.xlu0
        %v703 = vpop.trf.xlu0
        %v704 = vpop.trf.xlu0
        %v705 = vpop.trf.xlu0
        %v706 = vpop.trf.xlu0
        %v707 = vpop.trf.xlu0
        %v708 = vpop.trf.xlu0
        %v709 = vpop.trf.xlu0
        %v710 = vpop.trf.xlu0
        %v711 = vpop.trf.xlu0
        %v712 = vpop.trf.xlu0
        %v713 = vpop.trf.xlu0
        %v714 = vpop.trf.xlu0
        %715 = vxpose.xlu0.b32.start [1/16] %v670, 128
        %716 = vxpose.xlu0.b32.cont [2/16] 0.0, 128
        %717 = vxpose.xlu0.b32.cont [3/16] 0.0, 128
        %718 = vxpose.xlu0.b32.cont [4/16] 0.0, 128
        %719 = vxpose.xlu0.b32.cont [5/16] 0.0, 128
        %720 = vxpose.xlu0.b32.cont [6/16] 0.0, 128
        %721 = vxpose.xlu0.b32.cont [7/16] 0.0, 128
        %722 = vxpose.xlu0.b32.cont [8/16] 0.0, 128
        %723 = vxpose.xlu0.b32.cont [9/16] 0.0, 128
        %724 = vxpose.xlu0.b32.cont [10/16] 0.0, 128
        %725 = vxpose.xlu0.b32.cont [11/16] 0.0, 128
        %726 = vxpose.xlu0.b32.cont [12/16] 0.0, 128
        %727 = vxpose.xlu0.b32.cont [13/16] 0.0, 128
        %728 = vxpose.xlu0.b32.cont [14/16] 0.0, 128
        %729 = vxpose.xlu0.b32.cont [15/16] 0.0, 128
        %730 = vxpose.xlu0.b32.end [16/16] 0.0, 128
        %v731 = vpop.trf.xlu0
        %v732 = vpop.trf.xlu0
        %v733 = vpop.trf.xlu0
        %v734 = vpop.trf.xlu0
        %v735 = vpop.trf.xlu0
        %v736 = vpop.trf.xlu0
        %v737 = vpop.trf.xlu0
        %v738 = vpop.trf.xlu0
        %v739 = vpop.trf.xlu0
        %v740 = vpop.trf.xlu0
        %v741 = vpop.trf.xlu0
        %v742 = vpop.trf.xlu0
        %v743 = vpop.trf.xlu0
        %v744 = vpop.trf.xlu0
        %v745 = vpop.trf.xlu0
        %v746 = vpop.trf.xlu0
        %747 = vxpose.xlu0.b32.start [1/16] %v672, 128
        %748 = vxpose.xlu0.b32.cont [2/16] 0.0, 128
        %749 = vxpose.xlu0.b32.cont [3/16] 0.0, 128
        %750 = vxpose.xlu0.b32.cont [4/16] 0.0, 128
        %751 = vxpose.xlu0.b32.cont [5/16] 0.0, 128
        %752 = vxpose.xlu0.b32.cont [6/16] 0.0, 128
        %753 = vxpose.xlu0.b32.cont [7/16] 0.0, 128
        %754 = vxpose.xlu0.b32.cont [8/16] 0.0, 128
        %755 = vxpose.xlu0.b32.cont [9/16] 0.0, 128
        %756 = vxpose.xlu0.b32.cont [10/16] 0.0, 128
        %757 = vxpose.xlu0.b32.cont [11/16] 0.0, 128
        %758 = vxpose.xlu0.b32.cont [12/16] 0.0, 128
        %759 = vxpose.xlu0.b32.cont [13/16] 0.0, 128
        %760 = vxpose.xlu0.b32.cont [14/16] 0.0, 128
        %761 = vxpose.xlu0.b32.cont [15/16] 0.0, 128
        %762 = vxpose.xlu0.b32.end [16/16] 0.0, 128
        %v763 = vpop.trf.xlu0
        %v764 = vpop.trf.xlu0
        %v765 = vpop.trf.xlu0
        %v766 = vpop.trf.xlu0
        %v767 = vpop.trf.xlu0
        %v768 = vpop.trf.xlu0
        %v769 = vpop.trf.xlu0
        %v770 = vpop.trf.xlu0
        %v771 = vpop.trf.xlu0
        %v772 = vpop.trf.xlu0
        %v773 = vpop.trf.xlu0
        %v774 = vpop.trf.xlu0
        %v775 = vpop.trf.xlu0
        %v776 = vpop.trf.xlu0
        %v777 = vpop.trf.xlu0
        %v778 = vpop.trf.xlu0
        %779 = vxpose.xlu0.b32.start [1/16] %v674, 128
        %780 = vxpose.xlu0.b32.cont [2/16] 0.0, 128
        %781 = vxpose.xlu0.b32.cont [3/16] 0.0, 128
        %782 = vxpose.xlu0.b32.cont [4/16] 0.0, 128
        %783 = vxpose.xlu0.b32.cont [5/16] 0.0, 128
        %784 = vxpose.xlu0.b32.cont [6/16] 0.0, 128
        %785 = vxpose.xlu0.b32.cont [7/16] 0.0, 128
        %786 = vxpose.xlu0.b32.cont [8/16] 0.0, 128
        %787 = vxpose.xlu0.b32.cont [9/16] 0.0, 128
        %788 = vxpose.xlu0.b32.cont [10/16] 0.0, 128
        %789 = vxpose.xlu0.b32.cont [11/16] 0.0, 128
        %790 = vxpose.xlu0.b32.cont [12/16] 0.0, 128
        %791 = vxpose.xlu0.b32.cont [13/16] 0.0, 128
        %792 = vxpose.xlu0.b32.cont [14/16] 0.0, 128
        %793 = vxpose.xlu0.b32.cont [15/16] 0.0, 128
        %794 = vxpose.xlu0.b32.end [16/16] 0.0, 128
        %v795 = vpop.trf.xlu0
        %v796 = vpop.trf.xlu0
        %v797 = vpop.trf.xlu0
        %v798 = vpop.trf.xlu0
        %v799 = vpop.trf.xlu0
        %v800 = vpop.trf.xlu0
        %v801 = vpop.trf.xlu0
        %v802 = vpop.trf.xlu0
        %v803 = vpop.trf.xlu0
        %v804 = vpop.trf.xlu0
        %v805 = vpop.trf.xlu0
        %v806 = vpop.trf.xlu0
        %v807 = vpop.trf.xlu0
        %v808 = vpop.trf.xlu0
        %v809 = vpop.trf.xlu0
        %v810 = vpop.trf.xlu0
        %811 = vxpose.xlu0.b32.start [1/16] %v676, 128
        %812 = vxpose.xlu0.b32.cont [2/16] 0.0, 128
        %813 = vxpose.xlu0.b32.cont [3/16] 0.0, 128
        %814 = vxpose.xlu0.b32.cont [4/16] 0.0, 128
        %815 = vxpose.xlu0.b32.cont [5/16] 0.0, 128
        %816 = vxpose.xlu0.b32.cont [6/16] 0.0, 128
        %817 = vxpose.xlu0.b32.cont [7/16] 0.0, 128
        %818 = vxpose.xlu0.b32.cont [8/16] 0.0, 128
        %819 = vxpose.xlu0.b32.cont [9/16] 0.0, 128
        %820 = vxpose.xlu0.b32.cont [10/16] 0.0, 128
        %821 = vxpose.xlu0.b32.cont [11/16] 0.0, 128
        %822 = vxpose.xlu0.b32.cont [12/16] 0.0, 128
        %823 = vxpose.xlu0.b32.cont [13/16] 0.0, 128
        %824 = vxpose.xlu0.b32.cont [14/16] 0.0, 128
        %825 = vxpose.xlu0.b32.cont [15/16] 0.0, 128
        %826 = vxpose.xlu0.b32.end [16/16] 0.0, 128
        %v827 = vpop.trf.xlu0
        %v828 = vpop.trf.xlu0
        %v829 = vpop.trf.xlu0
        %v830 = vpop.trf.xlu0
        %v831 = vpop.trf.xlu0
        %v832 = vpop.trf.xlu0
        %v833 = vpop.trf.xlu0
        %v834 = vpop.trf.xlu0
        %v835 = vpop.trf.xlu0
        %v836 = vpop.trf.xlu0
        %v837 = vpop.trf.xlu0
        %v838 = vpop.trf.xlu0
        %v839 = vpop.trf.xlu0
        %v840 = vpop.trf.xlu0
        %v841 = vpop.trf.xlu0
        %v842 = vpop.trf.xlu0
        %843 = vxpose.xlu0.b32.start [1/16] %v678, 128
        %844 = vxpose.xlu0.b32.cont [2/16] 0.0, 128
        %845 = vxpose.xlu0.b32.cont [3/16] 0.0, 128
        %846 = vxpose.xlu0.b32.cont [4/16] 0.0, 128
        %847 = vxpose.xlu0.b32.cont [5/16] 0.0, 128
        %848 = vxpose.xlu0.b32.cont [6/16] 0.0, 128
        %849 = vxpose.xlu0.b32.cont [7/16] 0.0, 128
        %850 = vxpose.xlu0.b32.cont [8/16] 0.0, 128
        %851 = vxpose.xlu0.b32.cont [9/16] 0.0, 128
        %852 = vxpose.xlu0.b32.cont [10/16] 0.0, 128
        %853 = vxpose.xlu0.b32.cont [11/16] 0.0, 128
        %854 = vxpose.xlu0.b32.cont [12/16] 0.0, 128
        %855 = vxpose.xlu0.b32.cont [13/16] 0.0, 128
        %856 = vxpose.xlu0.b32.cont [14/16] 0.0, 128
        %857 = vxpose.xlu0.b32.cont [15/16] 0.0, 128
        %858 = vxpose.xlu0.b32.end [16/16] 0.0, 128
        %v859 = vpop.trf.xlu0
        %v860 = vpop.trf.xlu0
        %v861 = vpop.trf.xlu0
        %v862 = vpop.trf.xlu0
        %v863 = vpop.trf.xlu0
        %v864 = vpop.trf.xlu0
        %v865 = vpop.trf.xlu0
        %v866 = vpop.trf.xlu0
        %v867 = vpop.trf.xlu0
        %v868 = vpop.trf.xlu0
        %v869 = vpop.trf.xlu0
        %v870 = vpop.trf.xlu0
        %v871 = vpop.trf.xlu0
        %v872 = vpop.trf.xlu0
        %v873 = vpop.trf.xlu0
        %v874 = vpop.trf.xlu0
        %875 = vxpose.xlu0.b32.start [1/16] %v680, 128
        %876 = vxpose.xlu0.b32.cont [2/16] 0.0, 128
        %877 = vxpose.xlu0.b32.cont [3/16] 0.0, 128
        %878 = vxpose.xlu0.b32.cont [4/16] 0.0, 128
        %879 = vxpose.xlu0.b32.cont [5/16] 0.0, 128
        %880 = vxpose.xlu0.b32.cont [6/16] 0.0, 128
        %881 = vxpose.xlu0.b32.cont [7/16] 0.0, 128
        %882 = vxpose.xlu0.b32.cont [8/16] 0.0, 128
        %883 = vxpose.xlu0.b32.cont [9/16] 0.0, 128
        %884 = vxpose.xlu0.b32.cont [10/16] 0.0, 128
        %885 = vxpose.xlu0.b32.cont [11/16] 0.0, 128
        %886 = vxpose.xlu0.b32.cont [12/16] 0.0, 128
        %887 = vxpose.xlu0.b32.cont [13/16] 0.0, 128
        %888 = vxpose.xlu0.b32.cont [14/16] 0.0, 128
        %889 = vxpose.xlu0.b32.cont [15/16] 0.0, 128
        %890 = vxpose.xlu0.b32.end [16/16] 0.0, 128
        %v891 = vpop.trf.xlu0
        %v892 = vpop.trf.xlu0
        %v893 = vpop.trf.xlu0
        %v894 = vpop.trf.xlu0
        %v895 = vpop.trf.xlu0
        %v896 = vpop.trf.xlu0
        %v897 = vpop.trf.xlu0
        %v898 = vpop.trf.xlu0
        %v899 = vpop.trf.xlu0
        %v900 = vpop.trf.xlu0
        %v901 = vpop.trf.xlu0
        %v902 = vpop.trf.xlu0
        %v903 = vpop.trf.xlu0
        %v904 = vpop.trf.xlu0
        %v905 = vpop.trf.xlu0
        %v906 = vpop.trf.xlu0
        %907 = vxpose.xlu0.b32.start [1/16] %v682, 128
        %908 = vxpose.xlu0.b32.cont [2/16] 0.0, 128
        %909 = vxpose.xlu0.b32.cont [3/16] 0.0, 128
        %910 = vxpose.xlu0.b32.cont [4/16] 0.0, 128
        %911 = vxpose.xlu0.b32.cont [5/16] 0.0, 128
        %912 = vxpose.xlu0.b32.cont [6/16] 0.0, 128
        %913 = vxpose.xlu0.b32.cont [7/16] 0.0, 128
        %914 = vxpose.xlu0.b32.cont [8/16] 0.0, 128
        %915 = vxpose.xlu0.b32.cont [9/16] 0.0, 128
        %916 = vxpose.xlu0.b32.cont [10/16] 0.0, 128
        %917 = vxpose.xlu0.b32.cont [11/16] 0.0, 128
        %918 = vxpose.xlu0.b32.cont [12/16] 0.0, 128
        %919 = vxpose.xlu0.b32.cont [13/16] 0.0, 128
        %920 = vxpose.xlu0.b32.cont [14/16] 0.0, 128
        %921 = vxpose.xlu0.b32.cont [15/16] 0.0, 128
        %922 = vxpose.xlu0.b32.end [16/16] 0.0, 128
        %v923 = vpop.trf.xlu0
        %v924 = vpop.trf.xlu0
        %v925 = vpop.trf.xlu0
        %v926 = vpop.trf.xlu0
        %v927 = vpop.trf.xlu0
        %v928 = vpop.trf.xlu0
        %v929 = vpop.trf.xlu0
        %v930 = vpop.trf.xlu0
        %v931 = vpop.trf.xlu0
        %v932 = vpop.trf.xlu0
        %v933 = vpop.trf.xlu0
        %v934 = vpop.trf.xlu0
        %v935 = vpop.trf.xlu0
        %v936 = vpop.trf.xlu0
        %v937 = vpop.trf.xlu0
        %v938 = vpop.trf.xlu0
        %v939 = vrot.slane %v763, 4
        %v940 = vsel %vm146, %v939, %v699
        %v942 = vunpack.c.l.s4 1983009808
        %v943 = vunpack.c.0.s8 %v942
        %v944 = vperm.slane %v940, %v943
        %v945 = vrot.slane %v795, 4
        %v946 = vsel %vm146, %v945, %v731
        %v948 = vunpack.c.l.s4 1983009808
        %v949 = vunpack.c.0.s8 %v948
        %v950 = vperm.slane %v946, %v949
        %v951 = vrot.slane %v891, 4
        %v952 = vsel %vm146, %v951, %v827
        %v954 = vunpack.c.l.s4 1983009808
        %v955 = vunpack.c.0.s8 %v954
        %v956 = vperm.slane %v952, %v955
        %v957 = vrot.slane %v923, 4
        %v958 = vsel %vm146, %v957, %v859
        %v960 = vunpack.c.l.s4 1983009808
        %v961 = vunpack.c.0.s8 %v960
        %v962 = vperm.slane %v958, %v961
        %v963 = vrot.slane %v950, 4
        %v964 = vsel %vm146, %v963, %v944
        %v965 = vrot.slane %v944, 4
        %v966 = vsel %vm146, %v950, %v965
        %v968 = vunpack.c.l.s4 1934713408
        %v969 = vunpack.c.0.s8 %v968
        %v970 = vperm.slane %v964, %v969
        %v972 = vunpack.c.l.s4 1934713408
        %v973 = vunpack.c.0.s8 %v972
        %v974 = vperm.slane %v966, %v973
        %v975 = vrot.slane %v962, 4
        %v976 = vsel %vm146, %v975, %v956
        %v977 = vrot.slane %v956, 4
        %v978 = vsel %vm146, %v962, %v977
        %v980 = vunpack.c.l.s4 1934713408
        %v981 = vunpack.c.0.s8 %v980
        %v982 = vperm.slane %v976, %v981
        %v984 = vunpack.c.l.s4 1934713408
        %v985 = vunpack.c.0.s8 %v984
        %v986 = vperm.slane %v978, %v985
        %v987 = vrot.slane %v982, 4
        %v988 = vsel %vm146, %v987, %v970
        %v989 = vrot.slane %v970, 4
        %v990 = vsel %vm146, %v982, %v989
        %v991 = vrot.slane %v986, 4
        %v992 = vsel %vm146, %v991, %v974
        %v993 = vrot.slane %v974, 4
        %v994 = vsel %vm146, %v986, %v993
        %995 = vxpose.xlu0.b32.start [1/16] %v307, 128
        %996 = vxpose.xlu0.b32.cont [2/16] 0.0, 128
        %997 = vxpose.xlu0.b32.cont [3/16] 0.0, 128
        %998 = vxpose.xlu0.b32.cont [4/16] 0.0, 128
        %999 = vxpose.xlu0.b32.cont [5/16] 0.0, 128
        %1000 = vxpose.xlu0.b32.cont [6/16] 0.0, 128
        %1001 = vxpose.xlu0.b32.cont [7/16] 0.0, 128
        %1002 = vxpose.xlu0.b32.cont [8/16] 0.0, 128
        %1003 = vxpose.xlu0.b32.cont [9/16] 0.0, 128
        %1004 = vxpose.xlu0.b32.cont [10/16] 0.0, 128
        %1005 = vxpose.xlu0.b32.cont [11/16] 0.0, 128
        %1006 = vxpose.xlu0.b32.cont [12/16] 0.0, 128
        %1007 = vxpose.xlu0.b32.cont [13/16] 0.0, 128
        %1008 = vxpose.xlu0.b32.cont [14/16] 0.0, 128
        %1009 = vxpose.xlu0.b32.cont [15/16] 0.0, 128
        %1010 = vxpose.xlu0.b32.end [16/16] 0.0, 128
        %v1011 = vpop.trf.xlu0
        %v1012 = vpop.trf.xlu0
        %v1013 = vpop.trf.xlu0
        %v1014 = vpop.trf.xlu0
        %v1015 = vpop.trf.xlu0
        %v1016 = vpop.trf.xlu0
        %v1017 = vpop.trf.xlu0
        %v1018 = vpop.trf.xlu0
        %v1019 = vpop.trf.xlu0
        %v1020 = vpop.trf.xlu0
        %v1021 = vpop.trf.xlu0
        %v1022 = vpop.trf.xlu0
        %v1023 = vpop.trf.xlu0
        %v1024 = vpop.trf.xlu0
        %v1025 = vpop.trf.xlu0
        %v1026 = vpop.trf.xlu0
        %1027 = vxpose.xlu0.b32.start [1/16] %v308, 128
        %1028 = vxpose.xlu0.b32.cont [2/16] 0.0, 128
        %1029 = vxpose.xlu0.b32.cont [3/16] 0.0, 128
        %1030 = vxpose.xlu0.b32.cont [4/16] 0.0, 128
        %1031 = vxpose.xlu0.b32.cont [5/16] 0.0, 128
        %1032 = vxpose.xlu0.b32.cont [6/16] 0.0, 128
        %1033 = vxpose.xlu0.b32.cont [7/16] 0.0, 128
        %1034 = vxpose.xlu0.b32.cont [8/16] 0.0, 128
        %1035 = vxpose.xlu0.b32.cont [9/16] 0.0, 128
        %1036 = vxpose.xlu0.b32.cont [10/16] 0.0, 128
        %1037 = vxpose.xlu0.b32.cont [11/16] 0.0, 128
        %1038 = vxpose.xlu0.b32.cont [12/16] 0.0, 128
        %1039 = vxpose.xlu0.b32.cont [13/16] 0.0, 128
        %1040 = vxpose.xlu0.b32.cont [14/16] 0.0, 128
        %1041 = vxpose.xlu0.b32.cont [15/16] 0.0, 128
        %1042 = vxpose.xlu0.b32.end [16/16] 0.0, 128
        %v1043 = vpop.trf.xlu0
        %v1044 = vpop.trf.xlu0
        %v1045 = vpop.trf.xlu0
        %v1046 = vpop.trf.xlu0
        %v1047 = vpop.trf.xlu0
        %v1048 = vpop.trf.xlu0
        %v1049 = vpop.trf.xlu0
        %v1050 = vpop.trf.xlu0
        %v1051 = vpop.trf.xlu0
        %v1052 = vpop.trf.xlu0
        %v1053 = vpop.trf.xlu0
        %v1054 = vpop.trf.xlu0
        %v1055 = vpop.trf.xlu0
        %v1056 = vpop.trf.xlu0
        %v1057 = vpop.trf.xlu0
        %v1058 = vpop.trf.xlu0
        %1059 = vxpose.xlu0.b32.start [1/16] %v309, 128
        %1060 = vxpose.xlu0.b32.cont [2/16] 0.0, 128
        %1061 = vxpose.xlu0.b32.cont [3/16] 0.0, 128
        %1062 = vxpose.xlu0.b32.cont [4/16] 0.0, 128
        %1063 = vxpose.xlu0.b32.cont [5/16] 0.0, 128
        %1064 = vxpose.xlu0.b32.cont [6/16] 0.0, 128
        %1065 = vxpose.xlu0.b32.cont [7/16] 0.0, 128
        %1066 = vxpose.xlu0.b32.cont [8/16] 0.0, 128
        %1067 = vxpose.xlu0.b32.cont [9/16] 0.0, 128
        %1068 = vxpose.xlu0.b32.cont [10/16] 0.0, 128
        %1069 = vxpose.xlu0.b32.cont [11/16] 0.0, 128
        %1070 = vxpose.xlu0.b32.cont [12/16] 0.0, 128
        %1071 = vxpose.xlu0.b32.cont [13/16] 0.0, 128
        %1072 = vxpose.xlu0.b32.cont [14/16] 0.0, 128
        %1073 = vxpose.xlu0.b32.cont [15/16] 0.0, 128
        %1074 = vxpose.xlu0.b32.end [16/16] 0.0, 128
        %v1075 = vpop.trf.xlu0
        %v1076 = vpop.trf.xlu0
        %v1077 = vpop.trf.xlu0
        %v1078 = vpop.trf.xlu0
        %v1079 = vpop.trf.xlu0
        %v1080 = vpop.trf.xlu0
        %v1081 = vpop.trf.xlu0
        %v1082 = vpop.trf.xlu0
        %v1083 = vpop.trf.xlu0
        %v1084 = vpop.trf.xlu0
        %v1085 = vpop.trf.xlu0
        %v1086 = vpop.trf.xlu0
        %v1087 = vpop.trf.xlu0
        %v1088 = vpop.trf.xlu0
        %v1089 = vpop.trf.xlu0
        %v1090 = vpop.trf.xlu0
        %1091 = vxpose.xlu0.b32.start [1/16] %v310, 128
        %1092 = vxpose.xlu0.b32.cont [2/16] 0.0, 128
        %1093 = vxpose.xlu0.b32.cont [3/16] 0.0, 128
        %1094 = vxpose.xlu0.b32.cont [4/16] 0.0, 128
        %1095 = vxpose.xlu0.b32.cont [5/16] 0.0, 128
        %1096 = vxpose.xlu0.b32.cont [6/16] 0.0, 128
        %1097 = vxpose.xlu0.b32.cont [7/16] 0.0, 128
        %1098 = vxpose.xlu0.b32.cont [8/16] 0.0, 128
        %1099 = vxpose.xlu0.b32.cont [9/16] 0.0, 128
        %1100 = vxpose.xlu0.b32.cont [10/16] 0.0, 128
        %1101 = vxpose.xlu0.b32.cont [11/16] 0.0, 128
        %1102 = vxpose.xlu0.b32.cont [12/16] 0.0, 128
        %1103 = vxpose.xlu0.b32.cont [13/16] 0.0, 128
        %1104 = vxpose.xlu0.b32.cont [14/16] 0.0, 128
        %1105 = vxpose.xlu0.b32.cont [15/16] 0.0, 128
        %1106 = vxpose.xlu0.b32.end [16/16] 0.0, 128
        %v1107 = vpop.trf.xlu0
        %v1108 = vpop.trf.xlu0
        %v1109 = vpop.trf.xlu0
        %v1110 = vpop.trf.xlu0
        %v1111 = vpop.trf.xlu0
        %v1112 = vpop.trf.xlu0
        %v1113 = vpop.trf.xlu0
        %v1114 = vpop.trf.xlu0
        %v1115 = vpop.trf.xlu0
        %v1116 = vpop.trf.xlu0
        %v1117 = vpop.trf.xlu0
        %v1118 = vpop.trf.xlu0
        %v1119 = vpop.trf.xlu0
        %v1120 = vpop.trf.xlu0
        %v1121 = vpop.trf.xlu0
        %v1122 = vpop.trf.xlu0
        %1123 = vxpose.xlu0.b32.start [1/16] %v311, 128
        %1124 = vxpose.xlu0.b32.cont [2/16] 0.0, 128
        %1125 = vxpose.xlu0.b32.cont [3/16] 0.0, 128
        %1126 = vxpose.xlu0.b32.cont [4/16] 0.0, 128
        %1127 = vxpose.xlu0.b32.cont [5/16] 0.0, 128
        %1128 = vxpose.xlu0.b32.cont [6/16] 0.0, 128
        %1129 = vxpose.xlu0.b32.cont [7/16] 0.0, 128
        %1130 = vxpose.xlu0.b32.cont [8/16] 0.0, 128
        %1131 = vxpose.xlu0.b32.cont [9/16] 0.0, 128
        %1132 = vxpose.xlu0.b32.cont [10/16] 0.0, 128
        %1133 = vxpose.xlu0.b32.cont [11/16] 0.0, 128
        %1134 = vxpose.xlu0.b32.cont [12/16] 0.0, 128
        %1135 = vxpose.xlu0.b32.cont [13/16] 0.0, 128
        %1136 = vxpose.xlu0.b32.cont [14/16] 0.0, 128
        %1137 = vxpose.xlu0.b32.cont [15/16] 0.0, 128
        %1138 = vxpose.xlu0.b32.end [16/16] 0.0, 128
        %v1139 = vpop.trf.xlu0
        %v1140 = vpop.trf.xlu0
        %v1141 = vpop.trf.xlu0
        %v1142 = vpop.trf.xlu0
        %v1143 = vpop.trf.xlu0
        %v1144 = vpop.trf.xlu0
        %v1145 = vpop.trf.xlu0
        %v1146 = vpop.trf.xlu0
        %v1147 = vpop.trf.xlu0
        %v1148 = vpop.trf.xlu0
        %v1149 = vpop.trf.xlu0
        %v1150 = vpop.trf.xlu0
        %v1151 = vpop.trf.xlu0
        %v1152 = vpop.trf.xlu0
        %v1153 = vpop.trf.xlu0
        %v1154 = vpop.trf.xlu0
        %1155 = vxpose.xlu0.b32.start [1/16] %v312, 128
        %1156 = vxpose.xlu0.b32.cont [2/16] 0.0, 128
        %1157 = vxpose.xlu0.b32.cont [3/16] 0.0, 128
        %1158 = vxpose.xlu0.b32.cont [4/16] 0.0, 128
        %1159 = vxpose.xlu0.b32.cont [5/16] 0.0, 128
        %1160 = vxpose.xlu0.b32.cont [6/16] 0.0, 128
        %1161 = vxpose.xlu0.b32.cont [7/16] 0.0, 128
        %1162 = vxpose.xlu0.b32.cont [8/16] 0.0, 128
        %1163 = vxpose.xlu0.b32.cont [9/16] 0.0, 128
        %1164 = vxpose.xlu0.b32.cont [10/16] 0.0, 128
        %1165 = vxpose.xlu0.b32.cont [11/16] 0.0, 128
        %1166 = vxpose.xlu0.b32.cont [12/16] 0.0, 128
        %1167 = vxpose.xlu0.b32.cont [13/16] 0.0, 128
        %1168 = vxpose.xlu0.b32.cont [14/16] 0.0, 128
        %1169 = vxpose.xlu0.b32.cont [15/16] 0.0, 128
        %1170 = vxpose.xlu0.b32.end [16/16] 0.0, 128
        %v1171 = vpop.trf.xlu0
        %v1172 = vpop.trf.xlu0
        %v1173 = vpop.trf.xlu0
        %v1174 = vpop.trf.xlu0
        %v1175 = vpop.trf.xlu0
        %v1176 = vpop.trf.xlu0
        %v1177 = vpop.trf.xlu0
        %v1178 = vpop.trf.xlu0
        %v1179 = vpop.trf.xlu0
        %v1180 = vpop.trf.xlu0
        %v1181 = vpop.trf.xlu0
        %v1182 = vpop.trf.xlu0
        %v1183 = vpop.trf.xlu0
        %v1184 = vpop.trf.xlu0
        %v1185 = vpop.trf.xlu0
        %v1186 = vpop.trf.xlu0
        %1187 = vxpose.xlu0.b32.start [1/16] %v313, 128
        %1188 = vxpose.xlu0.b32.cont [2/16] 0.0, 128
        %1189 = vxpose.xlu0.b32.cont [3/16] 0.0, 128
        %1190 = vxpose.xlu0.b32.cont [4/16] 0.0, 128
        %1191 = vxpose.xlu0.b32.cont [5/16] 0.0, 128
        %1192 = vxpose.xlu0.b32.cont [6/16] 0.0, 128
        %1193 = vxpose.xlu0.b32.cont [7/16] 0.0, 128
        %1194 = vxpose.xlu0.b32.cont [8/16] 0.0, 128
        %1195 = vxpose.xlu0.b32.cont [9/16] 0.0, 128
        %1196 = vxpose.xlu0.b32.cont [10/16] 0.0, 128
        %1197 = vxpose.xlu0.b32.cont [11/16] 0.0, 128
        %1198 = vxpose.xlu0.b32.cont [12/16] 0.0, 128
        %1199 = vxpose.xlu0.b32.cont [13/16] 0.0, 128
        %1200 = vxpose.xlu0.b32.cont [14/16] 0.0, 128
        %1201 = vxpose.xlu0.b32.cont [15/16] 0.0, 128
        %1202 = vxpose.xlu0.b32.end [16/16] 0.0, 128
        %v1203 = vpop.trf.xlu0
        %v1204 = vpop.trf.xlu0
        %v1205 = vpop.trf.xlu0
        %v1206 = vpop.trf.xlu0
        %v1207 = vpop.trf.xlu0
        %v1208 = vpop.trf.xlu0
        %v1209 = vpop.trf.xlu0
        %v1210 = vpop.trf.xlu0
        %v1211 = vpop.trf.xlu0
        %v1212 = vpop.trf.xlu0
        %v1213 = vpop.trf.xlu0
        %v1214 = vpop.trf.xlu0
        %v1215 = vpop.trf.xlu0
        %v1216 = vpop.trf.xlu0
        %v1217 = vpop.trf.xlu0
        %v1218 = vpop.trf.xlu0
        %1219 = vxpose.xlu0.b32.start [1/16] %v314, 128
        %1220 = vxpose.xlu0.b32.cont [2/16] 0.0, 128
        %1221 = vxpose.xlu0.b32.cont [3/16] 0.0, 128
        %1222 = vxpose.xlu0.b32.cont [4/16] 0.0, 128
        %1223 = vxpose.xlu0.b32.cont [5/16] 0.0, 128
        %1224 = vxpose.xlu0.b32.cont [6/16] 0.0, 128
        %1225 = vxpose.xlu0.b32.cont [7/16] 0.0, 128
        %1226 = vxpose.xlu0.b32.cont [8/16] 0.0, 128
        %1227 = vxpose.xlu0.b32.cont [9/16] 0.0, 128
        %1228 = vxpose.xlu0.b32.cont [10/16] 0.0, 128
        %1229 = vxpose.xlu0.b32.cont [11/16] 0.0, 128
        %1230 = vxpose.xlu0.b32.cont [12/16] 0.0, 128
        %1231 = vxpose.xlu0.b32.cont [13/16] 0.0, 128
        %1232 = vxpose.xlu0.b32.cont [14/16] 0.0, 128
        %1233 = vxpose.xlu0.b32.cont [15/16] 0.0, 128
        %1234 = vxpose.xlu0.b32.end [16/16] 0.0, 128
        %v1235 = vpop.trf.xlu0
        %v1236 = vpop.trf.xlu0
        %v1237 = vpop.trf.xlu0
        %v1238 = vpop.trf.xlu0
        %v1239 = vpop.trf.xlu0
        %v1240 = vpop.trf.xlu0
        %v1241 = vpop.trf.xlu0
        %v1242 = vpop.trf.xlu0
        %v1243 = vpop.trf.xlu0
        %v1244 = vpop.trf.xlu0
        %v1245 = vpop.trf.xlu0
        %v1246 = vpop.trf.xlu0
        %v1247 = vpop.trf.xlu0
        %v1248 = vpop.trf.xlu0
        %v1249 = vpop.trf.xlu0
        %v1250 = vpop.trf.xlu0
        %v1251 = vrot.slane %v1075, 4
        %v1252 = vsel %vm146, %v1251, %v1011
        %v1253 = vrot.slane %v1011, 4
        %v1254 = vsel %vm146, %v1075, %v1253
        %v1256 = vunpack.c.l.s4 1983009808
        %v1257 = vunpack.c.0.s8 %v1256
        %v1258 = vperm.slane %v1252, %v1257
        %v1260 = vunpack.c.l.s4 1983009808
        %v1261 = vunpack.c.0.s8 %v1260
        %v1262 = vperm.slane %v1254, %v1261
        %v1263 = vrot.slane %v1107, 4
        %v1264 = vsel %vm146, %v1263, %v1043
        %v1265 = vrot.slane %v1043, 4
        %v1266 = vsel %vm146, %v1107, %v1265
        %v1268 = vunpack.c.l.s4 1983009808
        %v1269 = vunpack.c.0.s8 %v1268
        %v1270 = vperm.slane %v1264, %v1269
        %v1272 = vunpack.c.l.s4 1983009808
        %v1273 = vunpack.c.0.s8 %v1272
        %v1274 = vperm.slane %v1266, %v1273
        %v1275 = vrot.slane %v1203, 4
        %v1276 = vsel %vm146, %v1275, %v1139
        %v1277 = vrot.slane %v1139, 4
        %v1278 = vsel %vm146, %v1203, %v1277
        %v1280 = vunpack.c.l.s4 1983009808
        %v1281 = vunpack.c.0.s8 %v1280
        %v1282 = vperm.slane %v1276, %v1281
        %v1284 = vunpack.c.l.s4 1983009808
        %v1285 = vunpack.c.0.s8 %v1284
        %v1286 = vperm.slane %v1278, %v1285
        %v1287 = vrot.slane %v1235, 4
        %v1288 = vsel %vm146, %v1287, %v1171
        %v1289 = vrot.slane %v1171, 4
        %v1290 = vsel %vm146, %v1235, %v1289
        %v1292 = vunpack.c.l.s4 1983009808
        %v1293 = vunpack.c.0.s8 %v1292
        %v1294 = vperm.slane %v1288, %v1293
        %v1296 = vunpack.c.l.s4 1983009808
        %v1297 = vunpack.c.0.s8 %v1296
        %v1298 = vperm.slane %v1290, %v1297
        %v1299 = vrot.slane %v1270, 4
        %v1300 = vsel %vm146, %v1299, %v1258
        %v1301 = vrot.slane %v1258, 4
        %v1302 = vsel %vm146, %v1270, %v1301
        %v1304 = vunpack.c.l.s4 1934713408
        %v1305 = vunpack.c.0.s8 %v1304
        %v1306 = vperm.slane %v1300, %v1305
        %v1308 = vunpack.c.l.s4 1934713408
        %v1309 = vunpack.c.0.s8 %v1308
        %v1310 = vperm.slane %v1302, %v1309
        %v1311 = vrot.slane %v1274, 4
        %v1312 = vsel %vm146, %v1311, %v1262
        %v1313 = vrot.slane %v1262, 4
        %v1314 = vsel %vm146, %v1274, %v1313
        %v1316 = vunpack.c.l.s4 1934713408
        %v1317 = vunpack.c.0.s8 %v1316
        %v1318 = vperm.slane %v1312, %v1317
        %v1320 = vunpack.c.l.s4 1934713408
        %v1321 = vunpack.c.0.s8 %v1320
        %v1322 = vperm.slane %v1314, %v1321
        %v1323 = vrot.slane %v1294, 4
        %v1324 = vsel %vm146, %v1323, %v1282
        %v1325 = vrot.slane %v1282, 4
        %v1326 = vsel %vm146, %v1294, %v1325
        %v1328 = vunpack.c.l.s4 1934713408
        %v1329 = vunpack.c.0.s8 %v1328
        %v1330 = vperm.slane %v1324, %v1329
        %v1332 = vunpack.c.l.s4 1934713408
        %v1333 = vunpack.c.0.s8 %v1332
        %v1334 = vperm.slane %v1326, %v1333
        %v1335 = vrot.slane %v1298, 4
        %v1336 = vsel %vm146, %v1335, %v1286
        %v1337 = vrot.slane %v1286, 4
        %v1338 = vsel %vm146, %v1298, %v1337
        %v1340 = vunpack.c.l.s4 1934713408
        %v1341 = vunpack.c.0.s8 %v1340
        %v1342 = vperm.slane %v1336, %v1341
        %v1344 = vunpack.c.l.s4 1934713408
        %v1345 = vunpack.c.0.s8 %v1344
        %v1346 = vperm.slane %v1338, %v1345
        %v1347 = vrot.slane %v1330, 4
        %v1348 = vsel %vm146, %v1347, %v1306
        %v1349 = vrot.slane %v1306, 4
        %v1350 = vsel %vm146, %v1330, %v1349
        %v1351 = vrot.slane %v1334, 4
        %v1352 = vsel %vm146, %v1351, %v1310
        %v1353 = vrot.slane %v1310, 4
        %v1354 = vsel %vm146, %v1334, %v1353
        %v1355 = vrot.slane %v1342, 4
        %v1356 = vsel %vm146, %v1355, %v1318
        %v1357 = vrot.slane %v1318, 4
        %v1358 = vsel %vm146, %v1342, %v1357
        %v1359 = vrot.slane %v1346, 4
        %v1360 = vsel %vm146, %v1359, %v1322
        %v1361 = vrot.slane %v1322, 4
        %v1362 = vsel %vm146, %v1346, %v1361
        %1363 = vxpose.xlu0.b32.start [1/16] %v1348, 128
        %1364 = vxpose.xlu0.b32.cont [2/16] 0.0, 128
        %1365 = vxpose.xlu0.b32.cont [3/16] 0.0, 128
        %1366 = vxpose.xlu0.b32.cont [4/16] 0.0, 128
        %1367 = vxpose.xlu0.b32.cont [5/16] 0.0, 128
        %1368 = vxpose.xlu0.b32.cont [6/16] 0.0, 128
        %1369 = vxpose.xlu0.b32.cont [7/16] 0.0, 128
        %1370 = vxpose.xlu0.b32.cont [8/16] 0.0, 128
        %1371 = vxpose.xlu0.b32.cont [9/16] 0.0, 128
        %1372 = vxpose.xlu0.b32.cont [10/16] 0.0, 128
        %1373 = vxpose.xlu0.b32.cont [11/16] 0.0, 128
        %1374 = vxpose.xlu0.b32.cont [12/16] 0.0, 128
        %1375 = vxpose.xlu0.b32.cont [13/16] 0.0, 128
        %1376 = vxpose.xlu0.b32.cont [14/16] 0.0, 128
        %1377 = vxpose.xlu0.b32.cont [15/16] 0.0, 128
        %1378 = vxpose.xlu0.b32.end [16/16] 0.0, 128
        %v1379 = vpop.trf.xlu0
        %v1380 = vpop.trf.xlu0
        %v1381 = vpop.trf.xlu0
        %v1382 = vpop.trf.xlu0
        %v1383 = vpop.trf.xlu0
        %v1384 = vpop.trf.xlu0
        %v1385 = vpop.trf.xlu0
        %v1386 = vpop.trf.xlu0
        %v1387 = vpop.trf.xlu0
        %v1388 = vpop.trf.xlu0
        %v1389 = vpop.trf.xlu0
        %v1390 = vpop.trf.xlu0
        %v1391 = vpop.trf.xlu0
        %v1392 = vpop.trf.xlu0
        %v1393 = vpop.trf.xlu0
        %v1394 = vpop.trf.xlu0
        %1395 = vxpose.xlu0.b32.start [1/16] %v1350, 128
        %1396 = vxpose.xlu0.b32.cont [2/16] 0.0, 128
        %1397 = vxpose.xlu0.b32.cont [3/16] 0.0, 128
        %1398 = vxpose.xlu0.b32.cont [4/16] 0.0, 128
        %1399 = vxpose.xlu0.b32.cont [5/16] 0.0, 128
        %1400 = vxpose.xlu0.b32.cont [6/16] 0.0, 128
        %1401 = vxpose.xlu0.b32.cont [7/16] 0.0, 128
        %1402 = vxpose.xlu0.b32.cont [8/16] 0.0, 128
        %1403 = vxpose.xlu0.b32.cont [9/16] 0.0, 128
        %1404 = vxpose.xlu0.b32.cont [10/16] 0.0, 128
        %1405 = vxpose.xlu0.b32.cont [11/16] 0.0, 128
        %1406 = vxpose.xlu0.b32.cont [12/16] 0.0, 128
        %1407 = vxpose.xlu0.b32.cont [13/16] 0.0, 128
        %1408 = vxpose.xlu0.b32.cont [14/16] 0.0, 128
        %1409 = vxpose.xlu0.b32.cont [15/16] 0.0, 128
        %1410 = vxpose.xlu0.b32.end [16/16] 0.0, 128
        %v1411 = vpop.trf.xlu0
        %v1412 = vpop.trf.xlu0
        %v1413 = vpop.trf.xlu0
        %v1414 = vpop.trf.xlu0
        %v1415 = vpop.trf.xlu0
        %v1416 = vpop.trf.xlu0
        %v1417 = vpop.trf.xlu0
        %v1418 = vpop.trf.xlu0
        %v1419 = vpop.trf.xlu0
        %v1420 = vpop.trf.xlu0
        %v1421 = vpop.trf.xlu0
        %v1422 = vpop.trf.xlu0
        %v1423 = vpop.trf.xlu0
        %v1424 = vpop.trf.xlu0
        %v1425 = vpop.trf.xlu0
        %v1426 = vpop.trf.xlu0
        %1427 = vxpose.xlu0.b32.start [1/16] %v1352, 128
        %1428 = vxpose.xlu0.b32.cont [2/16] 0.0, 128
        %1429 = vxpose.xlu0.b32.cont [3/16] 0.0, 128
        %1430 = vxpose.xlu0.b32.cont [4/16] 0.0, 128
        %1431 = vxpose.xlu0.b32.cont [5/16] 0.0, 128
        %1432 = vxpose.xlu0.b32.cont [6/16] 0.0, 128
        %1433 = vxpose.xlu0.b32.cont [7/16] 0.0, 128
        %1434 = vxpose.xlu0.b32.cont [8/16] 0.0, 128
        %1435 = vxpose.xlu0.b32.cont [9/16] 0.0, 128
        %1436 = vxpose.xlu0.b32.cont [10/16] 0.0, 128
        %1437 = vxpose.xlu0.b32.cont [11/16] 0.0, 128
        %1438 = vxpose.xlu0.b32.cont [12/16] 0.0, 128
        %1439 = vxpose.xlu0.b32.cont [13/16] 0.0, 128
        %1440 = vxpose.xlu0.b32.cont [14/16] 0.0, 128
        %1441 = vxpose.xlu0.b32.cont [15/16] 0.0, 128
        %1442 = vxpose.xlu0.b32.end [16/16] 0.0, 128
        %v1443 = vpop.trf.xlu0
        %v1444 = vpop.trf.xlu0
        %v1445 = vpop.trf.xlu0
        %v1446 = vpop.trf.xlu0
        %v1447 = vpop.trf.xlu0
        %v1448 = vpop.trf.xlu0
        %v1449 = vpop.trf.xlu0
        %v1450 = vpop.trf.xlu0
        %v1451 = vpop.trf.xlu0
        %v1452 = vpop.trf.xlu0
        %v1453 = vpop.trf.xlu0
        %v1454 = vpop.trf.xlu0
        %v1455 = vpop.trf.xlu0
        %v1456 = vpop.trf.xlu0
        %v1457 = vpop.trf.xlu0
        %v1458 = vpop.trf.xlu0
        %1459 = vxpose.xlu0.b32.start [1/16] %v1354, 128
        %1460 = vxpose.xlu0.b32.cont [2/16] 0.0, 128
        %1461 = vxpose.xlu0.b32.cont [3/16] 0.0, 128
        %1462 = vxpose.xlu0.b32.cont [4/16] 0.0, 128
        %1463 = vxpose.xlu0.b32.cont [5/16] 0.0, 128
        %1464 = vxpose.xlu0.b32.cont [6/16] 0.0, 128
        %1465 = vxpose.xlu0.b32.cont [7/16] 0.0, 128
        %1466 = vxpose.xlu0.b32.cont [8/16] 0.0, 128
        %1467 = vxpose.xlu0.b32.cont [9/16] 0.0, 128
        %1468 = vxpose.xlu0.b32.cont [10/16] 0.0, 128
        %1469 = vxpose.xlu0.b32.cont [11/16] 0.0, 128
        %1470 = vxpose.xlu0.b32.cont [12/16] 0.0, 128
        %1471 = vxpose.xlu0.b32.cont [13/16] 0.0, 128
        %1472 = vxpose.xlu0.b32.cont [14/16] 0.0, 128
        %1473 = vxpose.xlu0.b32.cont [15/16] 0.0, 128
        %1474 = vxpose.xlu0.b32.end [16/16] 0.0, 128
        %v1475 = vpop.trf.xlu0
        %v1476 = vpop.trf.xlu0
        %v1477 = vpop.trf.xlu0
        %v1478 = vpop.trf.xlu0
        %v1479 = vpop.trf.xlu0
        %v1480 = vpop.trf.xlu0
        %v1481 = vpop.trf.xlu0
        %v1482 = vpop.trf.xlu0
        %v1483 = vpop.trf.xlu0
        %v1484 = vpop.trf.xlu0
        %v1485 = vpop.trf.xlu0
        %v1486 = vpop.trf.xlu0
        %v1487 = vpop.trf.xlu0
        %v1488 = vpop.trf.xlu0
        %v1489 = vpop.trf.xlu0
        %v1490 = vpop.trf.xlu0
        %1491 = vxpose.xlu0.b32.start [1/16] %v1356, 128
        %1492 = vxpose.xlu0.b32.cont [2/16] 0.0, 128
        %1493 = vxpose.xlu0.b32.cont [3/16] 0.0, 128
        %1494 = vxpose.xlu0.b32.cont [4/16] 0.0, 128
        %1495 = vxpose.xlu0.b32.cont [5/16] 0.0, 128
        %1496 = vxpose.xlu0.b32.cont [6/16] 0.0, 128
        %1497 = vxpose.xlu0.b32.cont [7/16] 0.0, 128
        %1498 = vxpose.xlu0.b32.cont [8/16] 0.0, 128
        %1499 = vxpose.xlu0.b32.cont [9/16] 0.0, 128
        %1500 = vxpose.xlu0.b32.cont [10/16] 0.0, 128
        %1501 = vxpose.xlu0.b32.cont [11/16] 0.0, 128
        %1502 = vxpose.xlu0.b32.cont [12/16] 0.0, 128
        %1503 = vxpose.xlu0.b32.cont [13/16] 0.0, 128
        %1504 = vxpose.xlu0.b32.cont [14/16] 0.0, 128
        %1505 = vxpose.xlu0.b32.cont [15/16] 0.0, 128
        %1506 = vxpose.xlu0.b32.end [16/16] 0.0, 128
        %v1507 = vpop.trf.xlu0
        %v1508 = vpop.trf.xlu0
        %v1509 = vpop.trf.xlu0
        %v1510 = vpop.trf.xlu0
        %v1511 = vpop.trf.xlu0
        %v1512 = vpop.trf.xlu0
        %v1513 = vpop.trf.xlu0
        %v1514 = vpop.trf.xlu0
        %v1515 = vpop.trf.xlu0
        %v1516 = vpop.trf.xlu0
        %v1517 = vpop.trf.xlu0
        %v1518 = vpop.trf.xlu0
        %v1519 = vpop.trf.xlu0
        %v1520 = vpop.trf.xlu0
        %v1521 = vpop.trf.xlu0
        %v1522 = vpop.trf.xlu0
        %1523 = vxpose.xlu0.b32.start [1/16] %v1358, 128
        %1524 = vxpose.xlu0.b32.cont [2/16] 0.0, 128
        %1525 = vxpose.xlu0.b32.cont [3/16] 0.0, 128
        %1526 = vxpose.xlu0.b32.cont [4/16] 0.0, 128
        %1527 = vxpose.xlu0.b32.cont [5/16] 0.0, 128
        %1528 = vxpose.xlu0.b32.cont [6/16] 0.0, 128
        %1529 = vxpose.xlu0.b32.cont [7/16] 0.0, 128
        %1530 = vxpose.xlu0.b32.cont [8/16] 0.0, 128
        %1531 = vxpose.xlu0.b32.cont [9/16] 0.0, 128
        %1532 = vxpose.xlu0.b32.cont [10/16] 0.0, 128
        %1533 = vxpose.xlu0.b32.cont [11/16] 0.0, 128
        %1534 = vxpose.xlu0.b32.cont [12/16] 0.0, 128
        %1535 = vxpose.xlu0.b32.cont [13/16] 0.0, 128
        %1536 = vxpose.xlu0.b32.cont [14/16] 0.0, 128
        %1537 = vxpose.xlu0.b32.cont [15/16] 0.0, 128
        %1538 = vxpose.xlu0.b32.end [16/16] 0.0, 128
        %v1539 = vpop.trf.xlu0
        %v1540 = vpop.trf.xlu0
        %v1541 = vpop.trf.xlu0
        %v1542 = vpop.trf.xlu0
        %v1543 = vpop.trf.xlu0
        %v1544 = vpop.trf.xlu0
        %v1545 = vpop.trf.xlu0
        %v1546 = vpop.trf.xlu0
        %v1547 = vpop.trf.xlu0
        %v1548 = vpop.trf.xlu0
        %v1549 = vpop.trf.xlu0
        %v1550 = vpop.trf.xlu0
        %v1551 = vpop.trf.xlu0
        %v1552 = vpop.trf.xlu0
        %v1553 = vpop.trf.xlu0
        %v1554 = vpop.trf.xlu0
        %1555 = vxpose.xlu0.b32.start [1/16] %v1360, 128
        %1556 = vxpose.xlu0.b32.cont [2/16] 0.0, 128
        %1557 = vxpose.xlu0.b32.cont [3/16] 0.0, 128
        %1558 = vxpose.xlu0.b32.cont [4/16] 0.0, 128
        %1559 = vxpose.xlu0.b32.cont [5/16] 0.0, 128
        %1560 = vxpose.xlu0.b32.cont [6/16] 0.0, 128
        %1561 = vxpose.xlu0.b32.cont [7/16] 0.0, 128
        %1562 = vxpose.xlu0.b32.cont [8/16] 0.0, 128
        %1563 = vxpose.xlu0.b32.cont [9/16] 0.0, 128
        %1564 = vxpose.xlu0.b32.cont [10/16] 0.0, 128
        %1565 = vxpose.xlu0.b32.cont [11/16] 0.0, 128
        %1566 = vxpose.xlu0.b32.cont [12/16] 0.0, 128
        %1567 = vxpose.xlu0.b32.cont [13/16] 0.0, 128
        %1568 = vxpose.xlu0.b32.cont [14/16] 0.0, 128
        %1569 = vxpose.xlu0.b32.cont [15/16] 0.0, 128
        %1570 = vxpose.xlu0.b32.end [16/16] 0.0, 128
        %v1571 = vpop.trf.xlu0
        %v1572 = vpop.trf.xlu0
        %v1573 = vpop.trf.xlu0
        %v1574 = vpop.trf.xlu0
        %v1575 = vpop.trf.xlu0
        %v1576 = vpop.trf.xlu0
        %v1577 = vpop.trf.xlu0
        %v1578 = vpop.trf.xlu0
        %v1579 = vpop.trf.xlu0
        %v1580 = vpop.trf.xlu0
        %v1581 = vpop.trf.xlu0
        %v1582 = vpop.trf.xlu0
        %v1583 = vpop.trf.xlu0
        %v1584 = vpop.trf.xlu0
        %v1585 = vpop.trf.xlu0
        %v1586 = vpop.trf.xlu0
        %1587 = vxpose.xlu0.b32.start [1/16] %v1362, 128
        %1588 = vxpose.xlu0.b32.cont [2/16] 0.0, 128
        %1589 = vxpose.xlu0.b32.cont [3/16] 0.0, 128
        %1590 = vxpose.xlu0.b32.cont [4/16] 0.0, 128
        %1591 = vxpose.xlu0.b32.cont [5/16] 0.0, 128
        %1592 = vxpose.xlu0.b32.cont [6/16] 0.0, 128
        %1593 = vxpose.xlu0.b32.cont [7/16] 0.0, 128
        %1594 = vxpose.xlu0.b32.cont [8/16] 0.0, 128
        %1595 = vxpose.xlu0.b32.cont [9/16] 0.0, 128
        %1596 = vxpose.xlu0.b32.cont [10/16] 0.0, 128
        %1597 = vxpose.xlu0.b32.cont [11/16] 0.0, 128
        %1598 = vxpose.xlu0.b32.cont [12/16] 0.0, 128
        %1599 = vxpose.xlu0.b32.cont [13/16] 0.0, 128
        %1600 = vxpose.xlu0.b32.cont [14/16] 0.0, 128
        %1601 = vxpose.xlu0.b32.cont [15/16] 0.0, 128
        %1602 = vxpose.xlu0.b32.end [16/16] 0.0, 128
        %v1603 = vpop.trf.xlu0
        %v1604 = vpop.trf.xlu0
        %v1605 = vpop.trf.xlu0
        %v1606 = vpop.trf.xlu0
        %v1607 = vpop.trf.xlu0
        %v1608 = vpop.trf.xlu0
        %v1609 = vpop.trf.xlu0
        %v1610 = vpop.trf.xlu0
        %v1611 = vpop.trf.xlu0
        %v1612 = vpop.trf.xlu0
        %v1613 = vpop.trf.xlu0
        %v1614 = vpop.trf.xlu0
        %v1615 = vpop.trf.xlu0
        %v1616 = vpop.trf.xlu0
        %v1617 = vpop.trf.xlu0
        %v1618 = vpop.trf.xlu0
        %v1619 = vrot.slane %v1443, 4
        %v1620 = vsel %vm146, %v1619, %v1379
        %v1622 = vunpack.c.l.s4 1983009808
        %v1623 = vunpack.c.0.s8 %v1622
        %v1624 = vperm.slane %v1620, %v1623
        %v1625 = vrot.slane %v1475, 4
        %v1626 = vsel %vm146, %v1625, %v1411
        %v1628 = vunpack.c.l.s4 1983009808
        %v1629 = vunpack.c.0.s8 %v1628
        %v1630 = vperm.slane %v1626, %v1629
        %v1631 = vrot.slane %v1571, 4
        %v1632 = vsel %vm146, %v1631, %v1507
        %v1634 = vunpack.c.l.s4 1983009808
        %v1635 = vunpack.c.0.s8 %v1634
        %v1636 = vperm.slane %v1632, %v1635
        %v1637 = vrot.slane %v1603, 4
        %v1638 = vsel %vm146, %v1637, %v1539
        %v1640 = vunpack.c.l.s4 1983009808
        %v1641 = vunpack.c.0.s8 %v1640
        %v1642 = vperm.slane %v1638, %v1641
        %v1643 = vrot.slane %v1630, 4
        %v1644 = vsel %vm146, %v1643, %v1624
        %v1645 = vrot.slane %v1624, 4
        %v1646 = vsel %vm146, %v1630, %v1645
        %v1648 = vunpack.c.l.s4 1934713408
        %v1649 = vunpack.c.0.s8 %v1648
        %v1650 = vperm.slane %v1644, %v1649
        %v1652 = vunpack.c.l.s4 1934713408
        %v1653 = vunpack.c.0.s8 %v1652
        %v1654 = vperm.slane %v1646, %v1653
        %v1655 = vrot.slane %v1642, 4
        %v1656 = vsel %vm146, %v1655, %v1636
        %v1657 = vrot.slane %v1636, 4
        %v1658 = vsel %vm146, %v1642, %v1657
        %v1660 = vunpack.c.l.s4 1934713408
        %v1661 = vunpack.c.0.s8 %v1660
        %v1662 = vperm.slane %v1656, %v1661
        %v1664 = vunpack.c.l.s4 1934713408
        %v1665 = vunpack.c.0.s8 %v1664
        %v1666 = vperm.slane %v1658, %v1665
        %v1667 = vrot.slane %v1662, 4
        %v1668 = vsel %vm146, %v1667, %v1650
        %v1669 = vrot.slane %v1650, 4
        %v1670 = vsel %vm146, %v1662, %v1669
        %v1671 = vrot.slane %v1666, 4
        %v1672 = vsel %vm146, %v1671, %v1654
        %v1673 = vrot.slane %v1654, 4
        %v1674 = vsel %vm146, %v1666, %v1673
        %vm1675 = vcmask 64512
        %v1677 = vsel %vm1675, %v988, 0
        %1679 = vmatpush.msra.mxu0 0.0
        %1680 = vmatpush.msra.mxu0 0.0
        %1681 = vmatpush.msra.mxu0 0.0
        %1682 = vmatpush.msra.mxu0 0.0
        %1683 = vmatpush.msra.mxu0 0.0
        %1684 = vmatpush.msra.mxu0 0.0
        %1685 = vmatpush.msra.mxu0 0.0
        %1686 = vmatpush.msra.mxu0 0.0
        %1687 = vmatpush.msra.mxu0 0.0
        %1688 = vmatpush.msra.mxu0 0.0
        %1689 = vmatpush.msra.mxu0 0.0
        %1690 = vmatpush.msra.mxu0 0.0
        %1691 = vmatpush.msra.mxu0 0.0
        %1692 = vmatpush.msra.mxu0 0.0
        %1693 = vmatpush.msra.mxu0 0.0
        %1694 = vmatpush.msra.mxu0 %v1668
        %1695 = vmatmul.f32.gmra.mxu0 %v1677
        %v1696 = vpop.f32.mrf.mxu0
        %v1697 = vadd.f32 0.0, %v1696
        %1698 = vdwg.mxu0
        %v1700 = vsel %vm1675, %v990, 0
        %1702 = vmatpush.msra.mxu0 0.0
        %1703 = vmatpush.msra.mxu0 0.0
        %1704 = vmatpush.msra.mxu0 0.0
        %1705 = vmatpush.msra.mxu0 0.0
        %1706 = vmatpush.msra.mxu0 0.0
        %1707 = vmatpush.msra.mxu0 0.0
        %1708 = vmatpush.msra.mxu0 0.0
        %1709 = vmatpush.msra.mxu0 0.0
        %1710 = vmatpush.msra.mxu0 0.0
        %1711 = vmatpush.msra.mxu0 0.0
        %1712 = vmatpush.msra.mxu0 0.0
        %1713 = vmatpush.msra.mxu0 0.0
        %1714 = vmatpush.msra.mxu0 0.0
        %1715 = vmatpush.msra.mxu0 0.0
        %1716 = vmatpush.msra.mxu0 0.0
        %1717 = vmatpush.msra.mxu0 %v1670
        %1718 = vmatmul.f32.gmra.mxu0 %v1700
        %v1719 = vpop.f32.mrf.mxu0
        %v1720 = vadd.f32 0.0, %v1719
        %1721 = vdwg.mxu0
        %v1723 = vsel %vm1675, %v992, 0
        %1725 = vmatpush.msra.mxu0 0.0
        %1726 = vmatpush.msra.mxu0 0.0
        %1727 = vmatpush.msra.mxu0 0.0
        %1728 = vmatpush.msra.mxu0 0.0
        %1729 = vmatpush.msra.mxu0 0.0
        %1730 = vmatpush.msra.mxu0 0.0
        %1731 = vmatpush.msra.mxu0 0.0
        %1732 = vmatpush.msra.mxu0 0.0
        %1733 = vmatpush.msra.mxu0 0.0
        %1734 = vmatpush.msra.mxu0 0.0
        %1735 = vmatpush.msra.mxu0 0.0
        %1736 = vmatpush.msra.mxu0 0.0
        %1737 = vmatpush.msra.mxu0 0.0
        %1738 = vmatpush.msra.mxu0 0.0
        %1739 = vmatpush.msra.mxu0 0.0
        %1740 = vmatpush.msra.mxu0 %v1672
        %1741 = vmatmul.f32.gmra.mxu0 %v1723
        %v1742 = vpop.f32.mrf.mxu0
        %v1743 = vadd.f32 0.0, %v1742
        %1744 = vdwg.mxu0
        %v1746 = vsel %vm1675, %v994, 0
        %1748 = vmatpush.msra.mxu0 0.0
        %1749 = vmatpush.msra.mxu0 0.0
        %1750 = vmatpush.msra.mxu0 0.0
        %1751 = vmatpush.msra.mxu0 0.0
        %1752 = vmatpush.msra.mxu0 0.0
        %1753 = vmatpush.msra.mxu0 0.0
        %1754 = vmatpush.msra.mxu0 0.0
        %1755 = vmatpush.msra.mxu0 0.0
        %1756 = vmatpush.msra.mxu0 0.0
        %1757 = vmatpush.msra.mxu0 0.0
        %1758 = vmatpush.msra.mxu0 0.0
        %1759 = vmatpush.msra.mxu0 0.0
        %1760 = vmatpush.msra.mxu0 0.0
        %1761 = vmatpush.msra.mxu0 0.0
        %1762 = vmatpush.msra.mxu0 0.0
        %1763 = vmatpush.msra.mxu0 %v1674
        %1764 = vmatmul.f32.gmra.mxu0 %v1746
        %v1765 = vpop.f32.mrf.mxu0
        %v1766 = vadd.f32 0.0, %v1765
        %1767 = vdwg.mxu0
        %1768 = vxpose.xlu0.b32.start [1/16] %v1697, 128
        %1769 = vxpose.xlu0.b32.cont [2/16] 0.0, 128
        %1770 = vxpose.xlu0.b32.cont [3/16] 0.0, 128
        %1771 = vxpose.xlu0.b32.cont [4/16] 0.0, 128
        %1772 = vxpose.xlu0.b32.cont [5/16] 0.0, 128
        %1773 = vxpose.xlu0.b32.cont [6/16] 0.0, 128
        %1774 = vxpose.xlu0.b32.cont [7/16] 0.0, 128
        %1775 = vxpose.xlu0.b32.cont [8/16] 0.0, 128
        %1776 = vxpose.xlu0.b32.cont [9/16] 0.0, 128
        %1777 = vxpose.xlu0.b32.cont [10/16] 0.0, 128
        %1778 = vxpose.xlu0.b32.cont [11/16] 0.0, 128
        %1779 = vxpose.xlu0.b32.cont [12/16] 0.0, 128
        %1780 = vxpose.xlu0.b32.cont [13/16] 0.0, 128
        %1781 = vxpose.xlu0.b32.cont [14/16] 0.0, 128
        %1782 = vxpose.xlu0.b32.cont [15/16] 0.0, 128
        %1783 = vxpose.xlu0.b32.end [16/16] 0.0, 128
        %v1784 = vpop.trf.xlu0
        %v1785 = vpop.trf.xlu0
        %v1786 = vpop.trf.xlu0
        %v1787 = vpop.trf.xlu0
        %v1788 = vpop.trf.xlu0
        %v1789 = vpop.trf.xlu0
        %v1790 = vpop.trf.xlu0
        %v1791 = vpop.trf.xlu0
        %v1792 = vpop.trf.xlu0
        %v1793 = vpop.trf.xlu0
        %v1794 = vpop.trf.xlu0
        %v1795 = vpop.trf.xlu0
        %v1796 = vpop.trf.xlu0
        %v1797 = vpop.trf.xlu0
        %v1798 = vpop.trf.xlu0
        %v1799 = vpop.trf.xlu0
        %1800 = vxpose.xlu0.b32.start [1/16] %v1720, 128
        %1801 = vxpose.xlu0.b32.cont [2/16] 0.0, 128
        %1802 = vxpose.xlu0.b32.cont [3/16] 0.0, 128
        %1803 = vxpose.xlu0.b32.cont [4/16] 0.0, 128
        %1804 = vxpose.xlu0.b32.cont [5/16] 0.0, 128
        %1805 = vxpose.xlu0.b32.cont [6/16] 0.0, 128
        %1806 = vxpose.xlu0.b32.cont [7/16] 0.0, 128
        %1807 = vxpose.xlu0.b32.cont [8/16] 0.0, 128
        %1808 = vxpose.xlu0.b32.cont [9/16] 0.0, 128
        %1809 = vxpose.xlu0.b32.cont [10/16] 0.0, 128
        %1810 = vxpose.xlu0.b32.cont [11/16] 0.0, 128
        %1811 = vxpose.xlu0.b32.cont [12/16] 0.0, 128
        %1812 = vxpose.xlu0.b32.cont [13/16] 0.0, 128
        %1813 = vxpose.xlu0.b32.cont [14/16] 0.0, 128
        %1814 = vxpose.xlu0.b32.cont [15/16] 0.0, 128
        %1815 = vxpose.xlu0.b32.end [16/16] 0.0, 128
        %v1816 = vpop.trf.xlu0
        %v1817 = vpop.trf.xlu0
        %v1818 = vpop.trf.xlu0
        %v1819 = vpop.trf.xlu0
        %v1820 = vpop.trf.xlu0
        %v1821 = vpop.trf.xlu0
        %v1822 = vpop.trf.xlu0
        %v1823 = vpop.trf.xlu0
        %v1824 = vpop.trf.xlu0
        %v1825 = vpop.trf.xlu0
        %v1826 = vpop.trf.xlu0
        %v1827 = vpop.trf.xlu0
        %v1828 = vpop.trf.xlu0
        %v1829 = vpop.trf.xlu0
        %v1830 = vpop.trf.xlu0
        %v1831 = vpop.trf.xlu0
        %1832 = vxpose.xlu0.b32.start [1/16] %v1743, 128
        %1833 = vxpose.xlu0.b32.cont [2/16] 0.0, 128
        %1834 = vxpose.xlu0.b32.cont [3/16] 0.0, 128
        %1835 = vxpose.xlu0.b32.cont [4/16] 0.0, 128
        %1836 = vxpose.xlu0.b32.cont [5/16] 0.0, 128
        %1837 = vxpose.xlu0.b32.cont [6/16] 0.0, 128
        %1838 = vxpose.xlu0.b32.cont [7/16] 0.0, 128
        %1839 = vxpose.xlu0.b32.cont [8/16] 0.0, 128
        %1840 = vxpose.xlu0.b32.cont [9/16] 0.0, 128
        %1841 = vxpose.xlu0.b32.cont [10/16] 0.0, 128
        %1842 = vxpose.xlu0.b32.cont [11/16] 0.0, 128
        %1843 = vxpose.xlu0.b32.cont [12/16] 0.0, 128
        %1844 = vxpose.xlu0.b32.cont [13/16] 0.0, 128
        %1845 = vxpose.xlu0.b32.cont [14/16] 0.0, 128
        %1846 = vxpose.xlu0.b32.cont [15/16] 0.0, 128
        %1847 = vxpose.xlu0.b32.end [16/16] 0.0, 128
        %v1848 = vpop.trf.xlu0
        %v1849 = vpop.trf.xlu0
        %v1850 = vpop.trf.xlu0
        %v1851 = vpop.trf.xlu0
        %v1852 = vpop.trf.xlu0
        %v1853 = vpop.trf.xlu0
        %v1854 = vpop.trf.xlu0
        %v1855 = vpop.trf.xlu0
        %v1856 = vpop.trf.xlu0
        %v1857 = vpop.trf.xlu0
        %v1858 = vpop.trf.xlu0
        %v1859 = vpop.trf.xlu0
        %v1860 = vpop.trf.xlu0
        %v1861 = vpop.trf.xlu0
        %v1862 = vpop.trf.xlu0
        %v1863 = vpop.trf.xlu0
        %1864 = vxpose.xlu0.b32.start [1/16] %v1766, 128
        %1865 = vxpose.xlu0.b32.cont [2/16] 0.0, 128
        %1866 = vxpose.xlu0.b32.cont [3/16] 0.0, 128
        %1867 = vxpose.xlu0.b32.cont [4/16] 0.0, 128
        %1868 = vxpose.xlu0.b32.cont [5/16] 0.0, 128
        %1869 = vxpose.xlu0.b32.cont [6/16] 0.0, 128
        %1870 = vxpose.xlu0.b32.cont [7/16] 0.0, 128
        %1871 = vxpose.xlu0.b32.cont [8/16] 0.0, 128
        %1872 = vxpose.xlu0.b32.cont [9/16] 0.0, 128
        %1873 = vxpose.xlu0.b32.cont [10/16] 0.0, 128
        %1874 = vxpose.xlu0.b32.cont [11/16] 0.0, 128
        %1875 = vxpose.xlu0.b32.cont [12/16] 0.0, 128
        %1876 = vxpose.xlu0.b32.cont [13/16] 0.0, 128
        %1877 = vxpose.xlu0.b32.cont [14/16] 0.0, 128
        %1878 = vxpose.xlu0.b32.cont [15/16] 0.0, 128
        %1879 = vxpose.xlu0.b32.end [16/16] 0.0, 128
        %v1880 = vpop.trf.xlu0
        %v1881 = vpop.trf.xlu0
        %v1882 = vpop.trf.xlu0
        %v1883 = vpop.trf.xlu0
        %v1884 = vpop.trf.xlu0
        %v1885 = vpop.trf.xlu0
        %v1886 = vpop.trf.xlu0
        %v1887 = vpop.trf.xlu0
        %v1888 = vpop.trf.xlu0
        %v1889 = vpop.trf.xlu0
        %v1890 = vpop.trf.xlu0
        %v1891 = vpop.trf.xlu0
        %v1892 = vpop.trf.xlu0
        %v1893 = vpop.trf.xlu0
        %v1894 = vpop.trf.xlu0
        %v1895 = vpop.trf.xlu0
        %v1896 = vrot.slane %v1848, 4
        %v1897 = vsel %vm146, %v1896, %v1784
        %v1898 = vrot.slane %v1784, 4
        %v1899 = vsel %vm146, %v1848, %v1898
        %v1901 = vunpack.c.l.s4 1983009808
        %v1902 = vunpack.c.0.s8 %v1901
        %v1903 = vperm.slane %v1897, %v1902
        %v1905 = vunpack.c.l.s4 1983009808
        %v1906 = vunpack.c.0.s8 %v1905
        %v1907 = vperm.slane %v1899, %v1906
        %v1908 = vrot.slane %v1880, 4
        %v1909 = vsel %vm146, %v1908, %v1816
        %v1910 = vrot.slane %v1816, 4
        %v1911 = vsel %vm146, %v1880, %v1910
        %v1913 = vunpack.c.l.s4 1983009808
        %v1914 = vunpack.c.0.s8 %v1913
        %v1915 = vperm.slane %v1909, %v1914
        %v1917 = vunpack.c.l.s4 1983009808
        %v1918 = vunpack.c.0.s8 %v1917
        %v1919 = vperm.slane %v1911, %v1918
        %v1920 = vrot.slane %v1915, 4
        %v1921 = vsel %vm146, %v1920, %v1903
        %v1922 = vrot.slane %v1903, 4
        %v1923 = vsel %vm146, %v1915, %v1922
        %v1925 = vunpack.c.l.s4 1934713408
        %v1926 = vunpack.c.0.s8 %v1925
        %v1927 = vperm.slane %v1921, %v1926
        %v1929 = vunpack.c.l.s4 1934713408
        %v1930 = vunpack.c.0.s8 %v1929
        %v1931 = vperm.slane %v1923, %v1930
        %v1932 = vrot.slane %v1919, 4
        %v1933 = vsel %vm146, %v1932, %v1907
        %v1934 = vrot.slane %v1907, 4
        %v1935 = vsel %vm146, %v1919, %v1934
        %v1937 = vunpack.c.l.s4 1934713408
        %v1938 = vunpack.c.0.s8 %v1937
        %v1939 = vperm.slane %v1933, %v1938
        %v1941 = vunpack.c.l.s4 1934713408
        %v1942 = vunpack.c.0.s8 %v1941
        %v1943 = vperm.slane %v1935, %v1942
        %v1944 = vrot.slane %v1927, 4
        %v1945 = vsel %vm146, 0.0, %v1944
        %v1946 = vrot.slane %v1931, 4
        %v1947 = vsel %vm146, 0.0, %v1946
        %v1948 = vrot.slane %v1939, 4
        %v1949 = vsel %vm146, 0.0, %v1948
        %v1950 = vrot.slane %v1943, 4
        %v1951 = vsel %vm146, 0.0, %v1950
        %v1952 = vsel %vm146, %v1946, %v1927
        %v1954 = vunpack.c.l.s4 1983009808
        %v1955 = vunpack.c.0.s8 %v1954
        %v1956 = vperm.slane %v1952, %v1955
        %v1957 = vrot.slane %v1947, 4
        %v1958 = vsel %vm146, %v1957, %v1945
        %v1960 = vunpack.c.l.s4 1983009808
        %v1961 = vunpack.c.0.s8 %v1960
        %v1962 = vperm.slane %v1958, %v1961
        %v1963 = vsel %vm146, %v1950, %v1939
        %v1965 = vunpack.c.l.s4 1983009808
        %v1966 = vunpack.c.0.s8 %v1965
        %v1967 = vperm.slane %v1963, %v1966
        %v1968 = vrot.slane %v1951, 4
        %v1969 = vsel %vm146, %v1968, %v1949
        %v1971 = vunpack.c.l.s4 1983009808
        %v1972 = vunpack.c.0.s8 %v1971
        %v1973 = vperm.slane %v1969, %v1972
        %v1974 = vrot.slane %v1962, 4
        %v1975 = vsel %vm146, %v1974, %v1956
        %v1976 = vrot.slane %v1956, 4
        %v1977 = vsel %vm146, %v1962, %v1976
        %v1979 = vunpack.c.l.s4 1934713408
        %v1980 = vunpack.c.0.s8 %v1979
        %v1981 = vperm.slane %v1975, %v1980
        %v1983 = vunpack.c.l.s4 1934713408
        %v1984 = vunpack.c.0.s8 %v1983
        %v1985 = vperm.slane %v1977, %v1984
        %v1986 = vrot.slane %v1973, 4
        %v1987 = vsel %vm146, %v1986, %v1967
        %v1988 = vrot.slane %v1967, 4
        %v1989 = vsel %vm146, %v1973, %v1988
        %v1991 = vunpack.c.l.s4 1934713408
        %v1992 = vunpack.c.0.s8 %v1991
        %v1993 = vperm.slane %v1987, %v1992
        %v1995 = vunpack.c.l.s4 1934713408
        %v1996 = vunpack.c.0.s8 %v1995
        %v1997 = vperm.slane %v1989, %v1996
        %v1998 = vrot.slane %v1993, 4
        %v1999 = vsel %vm146, %v1998, %v1981
        %v2000 = vrot.slane %v1981, 4
        %v2001 = vsel %vm146, %v1993, %v2000
        %v2002 = vrot.slane %v1997, 4
        %v2003 = vsel %vm146, %v2002, %v1985
        %v2004 = vrot.slane %v1985, 4
        %v2005 = vsel %vm146, %v1997, %v2004
        %2007 = vrot.lane.b32.xlu0 %v2001, 8
        %v2008 = vpop.permute.xlu0 %2007
        %2011 = vrot.lane.b32.xlu0 %v2003, 16
        %v2012 = vpop.permute.xlu0 %2011
        %2015 = vrot.lane.b32.xlu0 %v2005, 24
        %v2016 = vpop.permute.xlu0 %2015
        %v2018 = vsel %vm1675, %v1999, %v2008
        %vm2019 = vcmask 130048
        %v2020 = vsel %vm2019, %v2018, %v2012
        %vm2021 = vcmask 195584
        %v2022 = vsel %vm2021, %v2020, %v2016
        %vm2023 = vcmask 261120
        %2024 = vst.msk [vmem:[%s133] sm:$0xff] %vm2023, %v2022
        %s2025 = sand.u32 %s52, 1
        %s2026 = scalar_lea.sflag [#allocation4], %s2025
        %s2027 = sand.u32 %s52, 1
        %s2028 = smul.addr %s2027, 8
        %s2029 = scalar_lea.vmem [#allocation5], %s2028
        // Predicated region
        $region29: #{tpu_custom_call.1} parent=23 // pred_check
          %p2030 = pneg %p62
        $region30: #{tpu_custom_call.1} parent=23 // pred_check_branch
          %2032 = sbr.rel (%p2030) target = $region32
        $region31: #{tpu_custom_call.1} parent=23 // pred_region
          %2034 = vsyncadd %s2026, 0
          %s2035 = smul.addr %s18, 8
          %s2036 = scalar_lea.hbm %s1, %s2035
          %s2038 = sshll.u32 %s2029, 4
          %s2039 = int_to_ptr.vmem [resolvable:$true] %s2038
          %s2040 = sshll.u32 %s2036, 4
          %s2041 = int_to_ptr.hbm [resolvable:$true] %s2040
          %2043 = dma.vmem_to_hbm [thread:$0]  %s2039, 128, %s2041, %s2026
        $region32: #{tpu_custom_call.1} parent=23 // pred_fallthru
          _
      $region24: #{tpu_custom_call.1} parent=5 // pred_fallthru
        _
      %p2044 = scmp.le.s32.totalorder 2, %s13
      // Predicated region
      $region33: #{tpu_custom_call.1} parent=5 // pred_check
        %p2045 = pneg %p2044
      $region34: #{tpu_custom_call.1} parent=5 // pred_check_branch
        %2047 = sbr.rel (%p2045) target = $region36
      $region35: #{tpu_custom_call.1} parent=5 // pred_region
        %s2048 = ssub.s32 %s13, 2
        // Predicated region
        $region37: #{tpu_custom_call.1} parent=35 // pred_check
          %p2049 = pneg %p68
        $region38: #{tpu_custom_call.1} parent=35 // pred_check_branch
          %2051 = sbr.rel (%p2049) target = $region40
        $region39: #{tpu_custom_call.1} parent=35 // pred_region
          %s2052 = sand.u32 %s53, 1
          %s2053 = scalar_lea.sflag [#allocation4], %s2052
          %s2054 = sand.u32 %s53, 1
          %s2055 = smul.addr %s2054, 8
          %s2056 = scalar_lea.vmem [#allocation5], %s2055
          %2058 = dma.done %s2053, 128
        $region40: #{tpu_custom_call.1} parent=35 // pred_fallthru
          _
      $region36: #{tpu_custom_call.1} parent=5 // pred_fallthru
        _
    $region6: #{tpu_custom_call.1} parent=1 // loop_footer
      %s17 = sadd.s32 1, %s13
    $region7: #{tpu_custom_call.1} parent=1 // loop_footer_branch
      %12 = sbr.rel target = $region3
    $region8: #{tpu_custom_call.1} parent=1 // loop_exit
      _
    %2059 = vsyncpa [#allocation3], 1
    %s2060 = scalar_lea.sflag [#allocation3], 1
    %2061 = vsyncpa %s2060, 1
    %2062 = vsyncpa [#allocation4], 1
    %s2063 = scalar_lea.sflag [#allocation4], 1
    %2064 = vsyncpa %s2063, 1

</llo_original>
